<compile_context>
chip_gen: v6e
topology: v6e:2x2x1
jax: 0.10.0
libtpu: 0.0.40
codegen_flags: <defaults>
</compile_context>

<pallas_src>
import functools

import jax
import jax.numpy as jnp
from jax import lax
from jax.experimental import pallas as pl
from jax.experimental.pallas import tpu as pltpu

# MLP layer sizes (from NewTaipei_features12_NN.__init__)
LAYER_SIZES = [12, 24, 48, 48, 24, 24, 1]


def _round_up(n, m):
    return ((n + m - 1) // m) * m


def _mish(x):
    """Mish(x) = x * tanh(softplus(x)) via a single-exp rational form.

    tanh(log(1 + n)) = n(n+2) / (n(n+2) + 2) with n = exp(x).
    Clamp at 40: exp(40)^2 ~ 5.5e34 << f32 max, and for x > 40 the rational
    form already evaluates to x (== mish(x) to f32 precision), so no separate
    where/select branch is needed.  One EUP exp + one EUP approx reciprocal;
    one Newton step (VPU) restores ~f32 accuracy of the reciprocal.
    """
    n = jnp.exp(jnp.minimum(x, 40.0))
    t = n * (n + 2.0)
    d = t + 2.0
    r = pl.reciprocal(d, approx=True)
    r = r * (2.0 - d * r)              # one Newton step
    return x * t * r


def mlp_kernel(x_ref,
               w1, b1, w2, b2, w3, b3, w4, b4, w5, b5, w6, b6,
               o_ref):
    x = x_ref[...].astype(jnp.float32)                       # (tile_b, 12)

    # Layer 1: contract the shared 12-dim directly (fuses the transpose the
    # old version did on the host); result is (24, tile_b) -- batch on lanes.
    h = lax.dot_general(w1[...], x, (((1,), (1,)), ((), ())),
                        preferred_element_type=jnp.float32) + b1[...]
    h = _mish(h)

    # Remaining layers stay in the (features, batch) layout: W @ h + b.
    h = _mish(jnp.dot(w2[...], h, preferred_element_type=jnp.float32) + b2[...])
    h = _mish(jnp.dot(w3[...], h, preferred_element_type=jnp.float32) + b3[...])
    h = _mish(jnp.dot(w4[...], h, preferred_element_type=jnp.float32) + b4[...])
    h = _mish(jnp.dot(w5[...], h, preferred_element_type=jnp.float32) + b5[...])

    # Final Linear(24, 1) -- no activation, no dropout.
    out = jnp.dot(w6[...], h, preferred_element_type=jnp.float32) + b6[...]
    o_ref[...] = out.astype(o_ref.dtype)                     # lane-dense (1, tile_b)


def init_params(key):
    """Deterministic parameter init matching the module's shapes.

    Hidden layers: xavier_uniform weights, zero biases (as in linear_block).
    Output layer: PyTorch-default-style uniform init, zero bias.
    Weights stored PyTorch-native as (out_f, in_f); biases as (out_f, 1).
    """
    params = []
    keys = jax.random.split(key, len(LAYER_SIZES) - 1)
    for li, (fan_in, fan_out) in enumerate(zip(LAYER_SIZES[:-1], LAYER_SIZES[1:])):
        if li < len(LAYER_SIZES) - 2:
            bound = jnp.sqrt(6.0 / (fan_in + fan_out))   # xavier_uniform
        else:
            bound = 1.0 / jnp.sqrt(float(fan_in))        # out layer
        w = jax.random.uniform(keys[li], (fan_out, fan_in),
                               minval=-bound, maxval=bound, dtype=jnp.float32)
        b = jnp.zeros((fan_out, 1), dtype=jnp.float32)
        params.append((w, b))
    return params


@functools.partial(jax.jit, static_argnames=("max_tile_b",))
def features12_nn_forward(x, params, max_tile_b=4096):
    """x: (B, 12) float32 -> (B, 1) float32 (inference forward)."""
    B, in_f = x.shape
    assert in_f == LAYER_SIZES[0]

    # Batch tile: multiple of 256, chosen so the grid has >= 2 steps when the
    # batch allows it (v7x: two TensorCores share the parallel grid axis),
    # capped at max_tile_b for VMEM comfort.
    tile_b = max(256, min(int(max_tile_b), _round_up(-(-B // 2), 256)))
    n_tiles = pl.cdiv(B, tile_b)
    Bp = n_tiles * tile_b

    flat_params = []
    for w, b in params:
        flat_params.extend([w, b])
    # Parameters are tiny and fetched once (constant full-block index_map).
    param_specs = [pl.BlockSpec(p.shape, lambda i: (0, 0)) for p in flat_params]

    # Explicit scoped-VMEM budget: double-buffered input block ((tile_b, 12)
    # lane-padded to 128), output block, lane-padded param buffers, and ~8 live
    # (48, tile_b) f32 intermediates, with 2x headroom.  Clamp to 48 MiB so
    # v7x's 64 MiB physical VMEM keeps slack.
    in_block = 2 * 4 * tile_b * _round_up(in_f, 128)
    out_block = 2 * 4 * 8 * tile_b
    param_bufs = 2 * sum(4 * _round_up(p.shape[0], 8) * _round_up(p.shape[1], 128)
                         for p in flat_params)
    live_interm = 8 * 4 * 48 * tile_b
    vmem_limit = int(min(max(2 * (in_block + out_block + param_bufs + live_interm)
                             + (2 << 20), 8 << 20), 48 << 20))

    # Advisory cost estimate (~1 exp + 1 approx recip per hidden unit).
    hidden_units = sum(LAYER_SIZES[1:-1])
    flops = 2 * sum(a * b for a, b in zip(LAYER_SIZES[:-1], LAYER_SIZES[1:])) * Bp
    transcendentals = 2 * hidden_units * Bp
    param_bytes = sum(int(p.size) * 4 for p in flat_params)
    bytes_accessed = Bp * (in_f + 1) * 4 + param_bytes

    out_t = pl.pallas_call(
        mlp_kernel,
        out_shape=jax.ShapeDtypeStruct((1, B), jnp.float32),
        grid_spec=pltpu.PrefetchScalarGridSpec(
            num_scalar_prefetch=0,
            grid=(n_tiles,),
            in_specs=[pl.BlockSpec((tile_b, in_f), lambda i: (i, 0))] + param_specs,
            out_specs=pl.BlockSpec((1, tile_b), lambda i: (0, i)),
        ),
        compiler_params=pltpu.CompilerParams(
            dimension_semantics=("parallel",),
            vmem_limit_bytes=vmem_limit),
        cost_estimate=pl.CostEstimate(
            flops=flops,
            transcendentals=transcendentals,
            bytes_accessed=bytes_accessed),
    )(x, *flat_params)

    # (1, B) lane-dense slab -> (B, 1); tail lanes past B never exist in HBM
    # because Pallas masks the partial last output block.
    return out_t.reshape(B, 1)


def reference_forward(x, params):
    """Pure-JAX reference in the standard (batch, features) layout."""
    h = x
    for li, (w, b) in enumerate(params):
        h = h @ w.T + b.T
        if li < len(params) - 1:
            h = h * jnp.tanh(jax.nn.softplus(h))   # Mish
    return h


if __name__ == "__main__":
    key = jax.random.PRNGKey(0)
    kx, kp = jax.random.split(key)

    # Ragged batch (not a multiple of the tile) to exercise the partial-block
    # path; tile selection gives tile_b=512 -> grid of 2 steps (one per TC on v7x).
    B = 1000
    x = jax.random.normal(kx, (B, 12), dtype=jnp.float32)
    params = init_params(kp)

    out = jax.block_until_ready(features12_nn_forward(x, params))

    ref = reference_forward(x, params)
    assert out.shape == (B, 1)
    assert jnp.allclose(out, ref, atol=1e-4, rtol=1e-4), \
        float(jnp.max(jnp.abs(out - ref)))

    print("KERNEL_OK")
</pallas_src>

<mosaic_0001>
module attributes {stable_mosaic.version = 11 : i64} {
  func.func @mlp_kernel(%arg0: i32, %arg1: memref<512x12xf32, #tpu.memory_space<vmem>>, %arg2: memref<24x12xf32, #tpu.memory_space<vmem>>, %arg3: memref<24x1xf32, #tpu.memory_space<vmem>>, %arg4: memref<48x24xf32, #tpu.memory_space<vmem>>, %arg5: memref<48x1xf32, #tpu.memory_space<vmem>>, %arg6: memref<48x48xf32, #tpu.memory_space<vmem>>, %arg7: memref<48x1xf32, #tpu.memory_space<vmem>>, %arg8: memref<24x48xf32, #tpu.memory_space<vmem>>, %arg9: memref<24x1xf32, #tpu.memory_space<vmem>>, %arg10: memref<24x24xf32, #tpu.memory_space<vmem>>, %arg11: memref<24x1xf32, #tpu.memory_space<vmem>>, %arg12: memref<1x24xf32, #tpu.memory_space<vmem>>, %arg13: memref<1x1xf32, #tpu.memory_space<vmem>>, %arg14: memref<1x512xf32, #tpu.memory_space<vmem>>) attributes {dimension_semantics = [#tpu.dimension_semantics<parallel>], iteration_bounds = array<i64: 2>, scalar_prefetch = 0 : i64, scratch_operands = 0 : i64, tpu.core_type = #tpu.core_type<tc>, window_params = [{transform_indices = @transform_0, window_bounds = array<i64: 512, 12>}, {pipeline_mode = #tpu.pipeline_mode<synchronous>, transform_indices = @transform_1, window_bounds = array<i64: 24, 12>}, {pipeline_mode = #tpu.pipeline_mode<synchronous>, transform_indices = @transform_2, window_bounds = array<i64: 24, 1>}, {pipeline_mode = #tpu.pipeline_mode<synchronous>, transform_indices = @transform_3, window_bounds = array<i64: 48, 24>}, {pipeline_mode = #tpu.pipeline_mode<synchronous>, transform_indices = @transform_4, window_bounds = array<i64: 48, 1>}, {pipeline_mode = #tpu.pipeline_mode<synchronous>, transform_indices = @transform_5, window_bounds = array<i64: 48, 48>}, {pipeline_mode = #tpu.pipeline_mode<synchronous>, transform_indices = @transform_6, window_bounds = array<i64: 48, 1>}, {pipeline_mode = #tpu.pipeline_mode<synchronous>, transform_indices = @transform_7, window_bounds = array<i64: 24, 48>}, {pipeline_mode = #tpu.pipeline_mode<synchronous>, transform_indices = @transform_8, window_bounds = array<i64: 24, 1>}, {pipeline_mode = #tpu.pipeline_mode<synchronous>, transform_indices = @transform_9, window_bounds = array<i64: 24, 24>}, {pipeline_mode = #tpu.pipeline_mode<synchronous>, transform_indices = @transform_10, window_bounds = array<i64: 24, 1>}, {pipeline_mode = #tpu.pipeline_mode<synchronous>, transform_indices = @transform_11, window_bounds = array<i64: 1, 24>}, {pipeline_mode = #tpu.pipeline_mode<synchronous>, transform_indices = @transform_12, window_bounds = array<i64: 1, 1>}, {transform_indices = @transform_13, window_bounds = array<i64: 1, 512>}]} {
    %c0 = arith.constant 0 : index
    %c0_0 = arith.constant 0 : index
    %0 = vector.load %arg1[%c0, %c0_0] : memref<512x12xf32, #tpu.memory_space<vmem>>, vector<512x12xf32>
    %c0_1 = arith.constant 0 : index
    %c0_2 = arith.constant 0 : index
    %1 = vector.load %arg2[%c0_1, %c0_2] : memref<24x12xf32, #tpu.memory_space<vmem>>, vector<24x12xf32>
    %cst = arith.constant dense<0.000000e+00> : vector<24x512xf32>
    %2 = tpu.matmul %1, %0, %cst {dimension_numbers = #tpu.dot_dimension_numbers<[1], [1], [0], [0], [0, 0, 1, 0], [], []>} : vector<24x12xf32>, vector<512x12xf32>, vector<24x512xf32> -> vector<24x512xf32>
    %c0_3 = arith.constant 0 : index
    %c0_4 = arith.constant 0 : index
    %3 = vector.load %arg3[%c0_3, %c0_4] : memref<24x1xf32, #tpu.memory_space<vmem>>, vector<24x1xf32>
    %4 = vector.broadcast %3 : vector<24x1xf32> to vector<24x512xf32>
    %5 = arith.addf %2, %4 : vector<24x512xf32>
    %cst_5 = arith.constant 4.000000e+01 : f32
    %6 = vector.broadcast %cst_5 : f32 to vector<24x512xf32>
    %7 = arith.minimumf %5, %6 : vector<24x512xf32>
    %8 = math.exp %7 : vector<24x512xf32>
    %cst_6 = arith.constant 2.000000e+00 : f32
    %9 = vector.broadcast %cst_6 : f32 to vector<24x512xf32>
    %10 = arith.addf %8, %9 : vector<24x512xf32>
    %11 = arith.mulf %8, %10 : vector<24x512xf32>
    %cst_7 = arith.constant 2.000000e+00 : f32
    %12 = vector.broadcast %cst_7 : f32 to vector<24x512xf32>
    %13 = arith.addf %11, %12 : vector<24x512xf32>
    %14 = tpu.reciprocal %13 {approx = true} : vector<24x512xf32> -> vector<24x512xf32>
    %15 = arith.mulf %13, %14 : vector<24x512xf32>
    %cst_8 = arith.constant 2.000000e+00 : f32
    %16 = vector.broadcast %cst_8 : f32 to vector<24x512xf32>
    %17 = arith.subf %16, %15 : vector<24x512xf32>
    %18 = arith.mulf %14, %17 : vector<24x512xf32>
    %19 = arith.mulf %5, %11 : vector<24x512xf32>
    %20 = arith.mulf %19, %18 : vector<24x512xf32>
    %c0_9 = arith.constant 0 : index
    %c0_10 = arith.constant 0 : index
    %21 = vector.load %arg4[%c0_9, %c0_10] : memref<48x24xf32, #tpu.memory_space<vmem>>, vector<48x24xf32>
    %cst_11 = arith.constant dense<0.000000e+00> : vector<48x512xf32>
    %22 = tpu.matmul %21, %20, %cst_11 {dimension_numbers = #tpu.dot_dimension_numbers<[1], [0], [0], [1], [0, 0, 1, 1], [], []>} : vector<48x24xf32>, vector<24x512xf32>, vector<48x512xf32> -> vector<48x512xf32>
    %c0_12 = arith.constant 0 : index
    %c0_13 = arith.constant 0 : index
    %23 = vector.load %arg5[%c0_12, %c0_13] : memref<48x1xf32, #tpu.memory_space<vmem>>, vector<48x1xf32>
    %24 = vector.broadcast %23 : vector<48x1xf32> to vector<48x512xf32>
    %25 = arith.addf %22, %24 : vector<48x512xf32>
    %cst_14 = arith.constant 4.000000e+01 : f32
    %26 = vector.broadcast %cst_14 : f32 to vector<48x512xf32>
    %27 = arith.minimumf %25, %26 : vector<48x512xf32>
    %28 = math.exp %27 : vector<48x512xf32>
    %cst_15 = arith.constant 2.000000e+00 : f32
    %29 = vector.broadcast %cst_15 : f32 to vector<48x512xf32>
    %30 = arith.addf %28, %29 : vector<48x512xf32>
    %31 = arith.mulf %28, %30 : vector<48x512xf32>
    %cst_16 = arith.constant 2.000000e+00 : f32
    %32 = vector.broadcast %cst_16 : f32 to vector<48x512xf32>
    %33 = arith.addf %31, %32 : vector<48x512xf32>
    %34 = tpu.reciprocal %33 {approx = true} : vector<48x512xf32> -> vector<48x512xf32>
    %35 = arith.mulf %33, %34 : vector<48x512xf32>
    %cst_17 = arith.constant 2.000000e+00 : f32
    %36 = vector.broadcast %cst_17 : f32 to vector<48x512xf32>
    %37 = arith.subf %36, %35 : vector<48x512xf32>
    %38 = arith.mulf %34, %37 : vector<48x512xf32>
    %39 = arith.mulf %25, %31 : vector<48x512xf32>
    %40 = arith.mulf %39, %38 : vector<48x512xf32>
    %c0_18 = arith.constant 0 : index
    %c0_19 = arith.constant 0 : index
    %41 = vector.load %arg6[%c0_18, %c0_19] : memref<48x48xf32, #tpu.memory_space<vmem>>, vector<48x48xf32>
    %cst_20 = arith.constant dense<0.000000e+00> : vector<48x512xf32>
    %42 = tpu.matmul %41, %40, %cst_20 {dimension_numbers = #tpu.dot_dimension_numbers<[1], [0], [0], [1], [0, 0, 1, 1], [], []>} : vector<48x48xf32>, vector<48x512xf32>, vector<48x512xf32> -> vector<48x512xf32>
    %c0_21 = arith.constant 0 : index
    %c0_22 = arith.constant 0 : index
    %43 = vector.load %arg7[%c0_21, %c0_22] : memref<48x1xf32, #tpu.memory_space<vmem>>, vector<48x1xf32>
    %44 = vector.broadcast %43 : vector<48x1xf32> to vector<48x512xf32>
    %45 = arith.addf %42, %44 : vector<48x512xf32>
    %cst_23 = arith.constant 4.000000e+01 : f32
    %46 = vector.broadcast %cst_23 : f32 to vector<48x512xf32>
    %47 = arith.minimumf %45, %46 : vector<48x512xf32>
    %48 = math.exp %47 : vector<48x512xf32>
    %cst_24 = arith.constant 2.000000e+00 : f32
    %49 = vector.broadcast %cst_24 : f32 to vector<48x512xf32>
    %50 = arith.addf %48, %49 : vector<48x512xf32>
    %51 = arith.mulf %48, %50 : vector<48x512xf32>
    %cst_25 = arith.constant 2.000000e+00 : f32
    %52 = vector.broadcast %cst_25 : f32 to vector<48x512xf32>
    %53 = arith.addf %51, %52 : vector<48x512xf32>
    %54 = tpu.reciprocal %53 {approx = true} : vector<48x512xf32> -> vector<48x512xf32>
    %55 = arith.mulf %53, %54 : vector<48x512xf32>
    %cst_26 = arith.constant 2.000000e+00 : f32
    %56 = vector.broadcast %cst_26 : f32 to vector<48x512xf32>
    %57 = arith.subf %56, %55 : vector<48x512xf32>
    %58 = arith.mulf %54, %57 : vector<48x512xf32>
    %59 = arith.mulf %45, %51 : vector<48x512xf32>
    %60 = arith.mulf %59, %58 : vector<48x512xf32>
    %c0_27 = arith.constant 0 : index
    %c0_28 = arith.constant 0 : index
    %61 = vector.load %arg8[%c0_27, %c0_28] : memref<24x48xf32, #tpu.memory_space<vmem>>, vector<24x48xf32>
    %cst_29 = arith.constant dense<0.000000e+00> : vector<24x512xf32>
    %62 = tpu.matmul %61, %60, %cst_29 {dimension_numbers = #tpu.dot_dimension_numbers<[1], [0], [0], [1], [0, 0, 1, 1], [], []>} : vector<24x48xf32>, vector<48x512xf32>, vector<24x512xf32> -> vector<24x512xf32>
    %c0_30 = arith.constant 0 : index
    %c0_31 = arith.constant 0 : index
    %63 = vector.load %arg9[%c0_30, %c0_31] : memref<24x1xf32, #tpu.memory_space<vmem>>, vector<24x1xf32>
    %64 = vector.broadcast %63 : vector<24x1xf32> to vector<24x512xf32>
    %65 = arith.addf %62, %64 : vector<24x512xf32>
    %cst_32 = arith.constant 4.000000e+01 : f32
    %66 = vector.broadcast %cst_32 : f32 to vector<24x512xf32>
    %67 = arith.minimumf %65, %66 : vector<24x512xf32>
    %68 = math.exp %67 : vector<24x512xf32>
    %cst_33 = arith.constant 2.000000e+00 : f32
    %69 = vector.broadcast %cst_33 : f32 to vector<24x512xf32>
    %70 = arith.addf %68, %69 : vector<24x512xf32>
    %71 = arith.mulf %68, %70 : vector<24x512xf32>
    %cst_34 = arith.constant 2.000000e+00 : f32
    %72 = vector.broadcast %cst_34 : f32 to vector<24x512xf32>
    %73 = arith.addf %71, %72 : vector<24x512xf32>
    %74 = tpu.reciprocal %73 {approx = true} : vector<24x512xf32> -> vector<24x512xf32>
    %75 = arith.mulf %73, %74 : vector<24x512xf32>
    %cst_35 = arith.constant 2.000000e+00 : f32
    %76 = vector.broadcast %cst_35 : f32 to vector<24x512xf32>
    %77 = arith.subf %76, %75 : vector<24x512xf32>
    %78 = arith.mulf %74, %77 : vector<24x512xf32>
    %79 = arith.mulf %65, %71 : vector<24x512xf32>
    %80 = arith.mulf %79, %78 : vector<24x512xf32>
    %c0_36 = arith.constant 0 : index
    %c0_37 = arith.constant 0 : index
    %81 = vector.load %arg10[%c0_36, %c0_37] : memref<24x24xf32, #tpu.memory_space<vmem>>, vector<24x24xf32>
    %cst_38 = arith.constant dense<0.000000e+00> : vector<24x512xf32>
    %82 = tpu.matmul %81, %80, %cst_38 {dimension_numbers = #tpu.dot_dimension_numbers<[1], [0], [0], [1], [0, 0, 1, 1], [], []>} : vector<24x24xf32>, vector<24x512xf32>, vector<24x512xf32> -> vector<24x512xf32>
    %c0_39 = arith.constant 0 : index
    %c0_40 = arith.constant 0 : index
    %83 = vector.load %arg11[%c0_39, %c0_40] : memref<24x1xf32, #tpu.memory_space<vmem>>, vector<24x1xf32>
    %84 = vector.broadcast %83 : vector<24x1xf32> to vector<24x512xf32>
    %85 = arith.addf %82, %84 : vector<24x512xf32>
    %cst_41 = arith.constant 4.000000e+01 : f32
    %86 = vector.broadcast %cst_41 : f32 to vector<24x512xf32>
    %87 = arith.minimumf %85, %86 : vector<24x512xf32>
    %88 = math.exp %87 : vector<24x512xf32>
    %cst_42 = arith.constant 2.000000e+00 : f32
    %89 = vector.broadcast %cst_42 : f32 to vector<24x512xf32>
    %90 = arith.addf %88, %89 : vector<24x512xf32>
    %91 = arith.mulf %88, %90 : vector<24x512xf32>
    %cst_43 = arith.constant 2.000000e+00 : f32
    %92 = vector.broadcast %cst_43 : f32 to vector<24x512xf32>
    %93 = arith.addf %91, %92 : vector<24x512xf32>
    %94 = tpu.reciprocal %93 {approx = true} : vector<24x512xf32> -> vector<24x512xf32>
    %95 = arith.mulf %93, %94 : vector<24x512xf32>
    %cst_44 = arith.constant 2.000000e+00 : f32
    %96 = vector.broadcast %cst_44 : f32 to vector<24x512xf32>
    %97 = arith.subf %96, %95 : vector<24x512xf32>
    %98 = arith.mulf %94, %97 : vector<24x512xf32>
    %99 = arith.mulf %85, %91 : vector<24x512xf32>
    %100 = arith.mulf %99, %98 : vector<24x512xf32>
    %c0_45 = arith.constant 0 : index
    %c0_46 = arith.constant 0 : index
    %101 = vector.load %arg12[%c0_45, %c0_46] : memref<1x24xf32, #tpu.memory_space<vmem>>, vector<1x24xf32>
    %cst_47 = arith.constant dense<0.000000e+00> : vector<1x512xf32>
    %102 = tpu.matmul %101, %100, %cst_47 {dimension_numbers = #tpu.dot_dimension_numbers<[1], [0], [0], [1], [0, 0, 1, 1], [], []>} : vector<1x24xf32>, vector<24x512xf32>, vector<1x512xf32> -> vector<1x512xf32>
    %c0_48 = arith.constant 0 : index
    %c0_49 = arith.constant 0 : index
    %103 = vector.load %arg13[%c0_48, %c0_49] : memref<1x1xf32, #tpu.memory_space<vmem>>, vector<1x1xf32>
    %104 = vector.broadcast %103 : vector<1x1xf32> to vector<1x512xf32>
    %105 = arith.addf %102, %104 : vector<1x512xf32>
    %c0_50 = arith.constant 0 : index
    %c0_51 = arith.constant 0 : index
    %106 = vector.load %arg14[%c0_50, %c0_51] : memref<1x512xf32, #tpu.memory_space<vmem>>, vector<1x512xf32>
    tpu.vector_store %arg14[%c0_50, %c0_51], %105 {strides = array<i32>} : memref<1x512xf32, #tpu.memory_space<vmem>>, vector<1x512xf32>,
    return
  }
  func.func @transform_0(%arg0: i32) -> (i32, i32) {
    %c0_i32 = arith.constant 0 : i32
    %c0_i32_0 = arith.constant 0 : i32
    return %arg0, %c0_i32 : i32, i32
  }
  func.func @transform_1(%arg0: i32) -> (i32, i32) {
    %c0_i32 = arith.constant 0 : i32
    %c0_i32_0 = arith.constant 0 : i32
    %c0_i32_1 = arith.constant 0 : i32
    return %c0_i32, %c0_i32_0 : i32, i32
  }
  func.func @transform_2(%arg0: i32) -> (i32, i32) {
    %c0_i32 = arith.constant 0 : i32
    %c0_i32_0 = arith.constant 0 : i32
    %c0_i32_1 = arith.constant 0 : i32
    return %c0_i32, %c0_i32_0 : i32, i32
  }
  func.func @transform_3(%arg0: i32) -> (i32, i32) {
    %c0_i32 = arith.constant 0 : i32
    %c0_i32_0 = arith.constant 0 : i32
    %c0_i32_1 = arith.constant 0 : i32
    return %c0_i32, %c0_i32_0 : i32, i32
  }
  func.func @transform_4(%arg0: i32) -> (i32, i32) {
    %c0_i32 = arith.constant 0 : i32
    %c0_i32_0 = arith.constant 0 : i32
    %c0_i32_1 = arith.constant 0 : i32
    return %c0_i32, %c0_i32_0 : i32, i32
  }
  func.func @transform_5(%arg0: i32) -> (i32, i32) {
    %c0_i32 = arith.constant 0 : i32
    %c0_i32_0 = arith.constant 0 : i32
    %c0_i32_1 = arith.constant 0 : i32
    return %c0_i32, %c0_i32_0 : i32, i32
  }
  func.func @transform_6(%arg0: i32) -> (i32, i32) {
    %c0_i32 = arith.constant 0 : i32
    %c0_i32_0 = arith.constant 0 : i32
    %c0_i32_1 = arith.constant 0 : i32
    return %c0_i32, %c0_i32_0 : i32, i32
  }
  func.func @transform_7(%arg0: i32) -> (i32, i32) {
    %c0_i32 = arith.constant 0 : i32
    %c0_i32_0 = arith.constant 0 : i32
    %c0_i32_1 = arith.constant 0 : i32
    return %c0_i32, %c0_i32_0 : i32, i32
  }
  func.func @transform_8(%arg0: i32) -> (i32, i32) {
    %c0_i32 = arith.constant 0 : i32
    %c0_i32_0 = arith.constant 0 : i32
    %c0_i32_1 = arith.constant 0 : i32
    return %c0_i32, %c0_i32_0 : i32, i32
  }
  func.func @transform_9(%arg0: i32) -> (i32, i32) {
    %c0_i32 = arith.constant 0 : i32
    %c0_i32_0 = arith.constant 0 : i32
    %c0_i32_1 = arith.constant 0 : i32
    return %c0_i32, %c0_i32_0 : i32, i32
  }
  func.func @transform_10(%arg0: i32) -> (i32, i32) {
    %c0_i32 = arith.constant 0 : i32
    %c0_i32_0 = arith.constant 0 : i32
    %c0_i32_1 = arith.constant 0 : i32
    return %c0_i32, %c0_i32_0 : i32, i32
  }
  func.func @transform_11(%arg0: i32) -> (i32, i32) {
    %c0_i32 = arith.constant 0 : i32
    %c0_i32_0 = arith.constant 0 : i32
    %c0_i32_1 = arith.constant 0 : i32
    return %c0_i32, %c0_i32_0 : i32, i32
  }
  func.func @transform_12(%arg0: i32) -> (i32, i32) {
    %c0_i32 = arith.constant 0 : i32
    %c0_i32_0 = arith.constant 0 : i32
    %c0_i32_1 = arith.constant 0 : i32
    return %c0_i32, %c0_i32_0 : i32, i32
  }
  func.func @transform_13(%arg0: i32) -> (i32, i32) {
    %c0_i32 = arith.constant 0 : i32
    %c0_i32_0 = arith.constant 0 : i32
    return %c0_i32, %arg0 : i32, i32
  }
}

</mosaic_0001>

<llo_original>
// kernel: features12_nn_forward.1
$region0: #{features12_nn_forward.1}
  #allocation0 [shape = 'u32[]', space=smem, size = 0x4, offset = 0x4, fixed_abs, tag = 'smem constant byte address 0x4 - core index']
  #allocation1 [shape = 'u32[144,128]{1,0:T(1,128)}', space=vmem, size = 0x12000, scoped, tag = 'internal scratch']
  #allocation2 [shape = 'f32[1,1]{1,0:T(1,128)S(1)}', space=vmem, size = 0x200, scoped, tag = 'scoped memory for features12_nn_forward.1']
  %s0 = inlined_call_operand.vmem [shape: f32[1000,12], index: 0, kind: input, shape index: {}]
  %s1 = inlined_call_operand.vmem [shape: f32[24,12], index: 1, kind: input, shape index: {}]
  %s2 = inlined_call_operand.vmem [shape: f32[24,1], index: 2, kind: input, shape index: {}]
  %s3 = inlined_call_operand.vmem [shape: f32[48,24], index: 3, kind: input, shape index: {}]
  %s4 = inlined_call_operand.vmem [shape: f32[48,1], index: 4, kind: input, shape index: {}]
  %s5 = inlined_call_operand.vmem [shape: f32[48,48], index: 5, kind: input, shape index: {}]
  %s6 = inlined_call_operand.vmem [shape: f32[48,1], index: 6, kind: input, shape index: {}]
  %s7 = inlined_call_operand.vmem [shape: f32[24,48], index: 7, kind: input, shape index: {}]
  %s8 = inlined_call_operand.vmem [shape: f32[24,1], index: 8, kind: input, shape index: {}]
  %s9 = inlined_call_operand.vmem [shape: f32[24,24], index: 9, kind: input, shape index: {}]
  %s10 = inlined_call_operand.vmem [shape: f32[24,1], index: 10, kind: input, shape index: {}]
  %s11 = inlined_call_operand.vmem [shape: f32[1,24], index: 11, kind: input, shape index: {}]
  %s12 = inlined_call_operand.<no memory space> [shape: f32[1,1], index: 12, kind: input, shape index: {}]
  %s13 = inlined_call_operand.hbm [shape: f32[1,1000], index: 13, kind: output, shape index: {}]
  %s14 = sld [smem:[#allocation0]]
  $region85: #{features12_nn_forward.1} parent=0
    _
  %s16 = ssub.s32 1, %s14
  %s17 = scalar_select 0, %s16, %s14
  %v18 = vstv %s12
  %19 = vst [vmem:[#allocation2] sm:$0x1] %v18
  $region1: #{features12_nn_forward.1} parent=0
    #allocation3 [shape = 'u8[4096]{0}', space=vmem, size = 0x1000, scoped, tag = 'output window, operand 0']
    #allocation4 [shape = 's32[2]{0}', space=sflag, size = 0x8, scoped, tag = 'scoped memory for features12_nn_forward.1']
    %20 = vsyncpa [#allocation4], 0
    %s21 = scalar_lea.sflag [#allocation4], 1
    %22 = vsyncpa %s21, 0
    loop: start=0, step=1, limit=4
    $region2: #{features12_nn_forward.1} parent=1 // loop_pre_header
      _
    $region3: #{features12_nn_forward.1} parent=1 // loop_header
      %s24 = sphi 0, %s28
      %p25 = scmp.ge.s32.totalorder %s24, 4
      %s34 = sphi 0, %s36
      %s37 = sphi 0, %s34
      %s38 = sphi 0, %s37
      %s54 = sphi 0, %s38
      %s58 = sphi 0, %s58
      %s60 = sphi 0, %s58
      %s61 = sphi 0, %s60
      %s75 = sphi 0, %s61
      %s79 = sphi 0, %s79
      %s81 = sphi 0, %s79
      %s82 = sphi 0, %s81
      %s96 = sphi 0, %s82
      %s100 = sphi 0, %s100
      %s102 = sphi 0, %s100
      %s103 = sphi 0, %s102
      %s117 = sphi 0, %s103
      %s121 = sphi 0, %s121
      %s123 = sphi 0, %s121
      %s124 = sphi 0, %s123
      %s138 = sphi 0, %s124
      %s142 = sphi 0, %s142
      %s144 = sphi 0, %s142
      %s145 = sphi 0, %s144
      %s159 = sphi 0, %s145
      %s163 = sphi 0, %s163
      %s165 = sphi 0, %s163
      %s166 = sphi 0, %s165
      %s180 = sphi 0, %s166
      %s184 = sphi 0, %s184
      %s186 = sphi 0, %s184
      %s187 = sphi 0, %s186
      %s201 = sphi 0, %s187
      %s205 = sphi 0, %s205
      %s207 = sphi 0, %s205
      %s208 = sphi 0, %s207
      %s222 = sphi 0, %s208
      %s226 = sphi 0, %s226
      %s228 = sphi 0, %s226
      %s229 = sphi 0, %s228
      %s243 = sphi 0, %s229
      %s247 = sphi 0, %s247
      %s249 = sphi 0, %s247
      %s250 = sphi 0, %s249
      %s264 = sphi 0, %s250
      %s268 = sphi 0, %s268
      %s270 = sphi 0, %s268
      %s271 = sphi 0, %s270
      %s285 = sphi 0, %s271
      %s289 = sphi 0, %s289
      %s291 = sphi 0, %s289
      %s292 = sphi 0, %s291
      %s306 = sphi 0, %s292
      %s312 = sphi 0, %s314
      %s315 = sphi 0, %s312
      %s316 = sphi 0, %s315
      %s332 = sphi 0, %s316
    $region4: #{features12_nn_forward.1} parent=1 // loop_header_branch
      %27 = sbr.rel (%p25) target = $region8
    $region5: #{features12_nn_forward.1} parent=1 // loop_body
      %s29 = ssub.s32 %s24, 1
      %s30 = ssub.s32 %s24, 2
      %s31 = sadd.s32 %s24, 1
      %s32 = ssub.s32 %s24, %s31
      %p33 = scmp.eq.s32.totalorder %s32, 0
      %s35 = sadd.s32 %s34, 1
      %s36 = scalar_select %p33, %s34, %s35
      %p39 = pneg %p33
      %p40 = scmp.eq.s32.totalorder %s24, 1
      %p41 = por %p39, %p40
      %p42 = scmp.ne.s32.totalorder %s34, %s37
      %p43 = scmp.eq.s32.totalorder %s24, 0
      %p44 = por %p42, %p43
      %p45 = scmp.ne.s32.totalorder %s34, %s37
      %p46 = scmp.eq.s32.totalorder %s29, 1
      %p47 = por %p45, %p46
      %p48 = scmp.ne.s32.totalorder %s37, %s38
      %p49 = scmp.eq.s32.totalorder %s29, 0
      %p50 = por %p48, %p49
      %p51 = scmp.ne.s32.totalorder %s37, %s38
      %p52 = scmp.eq.s32.totalorder %s30, 1
      %p53 = por %p51, %p52
      %p55 = scmp.ne.s32.totalorder %s38, %s54
      %p56 = scmp.eq.s32.totalorder %s30, 0
      %p57 = por %p55, %p56
      %s59 = sadd.s32 %s58, 1
      %p62 = scmp.eq.s32.totalorder %s24, 1
      %p63 = scmp.ne.s32.totalorder %s58, %s60
      %p64 = scmp.eq.s32.totalorder %s24, 0
      %p65 = por %p63, %p64
      %p66 = scmp.ne.s32.totalorder %s58, %s60
      %p67 = scmp.eq.s32.totalorder %s29, 1
      %p68 = por %p66, %p67
      %p69 = scmp.ne.s32.totalorder %s60, %s61
      %p70 = scmp.eq.s32.totalorder %s29, 0
      %p71 = por %p69, %p70
      %p72 = scmp.ne.s32.totalorder %s60, %s61
      %p73 = scmp.eq.s32.totalorder %s30, 1
      %p74 = por %p72, %p73
      %p76 = scmp.ne.s32.totalorder %s61, %s75
      %p77 = scmp.eq.s32.totalorder %s30, 0
      %p78 = por %p76, %p77
      %s80 = sadd.s32 %s79, 1
      %p83 = scmp.eq.s32.totalorder %s24, 1
      %p84 = scmp.ne.s32.totalorder %s79, %s81
      %p85 = scmp.eq.s32.totalorder %s24, 0
      %p86 = por %p84, %p85
      %p87 = scmp.ne.s32.totalorder %s79, %s81
      %p88 = scmp.eq.s32.totalorder %s29, 1
      %p89 = por %p87, %p88
      %p90 = scmp.ne.s32.totalorder %s81, %s82
      %p91 = scmp.eq.s32.totalorder %s29, 0
      %p92 = por %p90, %p91
      %p93 = scmp.ne.s32.totalorder %s81, %s82
      %p94 = scmp.eq.s32.totalorder %s30, 1
      %p95 = por %p93, %p94
      %p97 = scmp.ne.s32.totalorder %s82, %s96
      %p98 = scmp.eq.s32.totalorder %s30, 0
      %p99 = por %p97, %p98
      %s101 = sadd.s32 %s100, 1
      %p104 = scmp.eq.s32.totalorder %s24, 1
      %p105 = scmp.ne.s32.totalorder %s100, %s102
      %p106 = scmp.eq.s32.totalorder %s24, 0
      %p107 = por %p105, %p106
      %p108 = scmp.ne.s32.totalorder %s100, %s102
      %p109 = scmp.eq.s32.totalorder %s29, 1
      %p110 = por %p108, %p109
      %p111 = scmp.ne.s32.totalorder %s102, %s103
      %p112 = scmp.eq.s32.totalorder %s29, 0
      %p113 = por %p111, %p112
      %p114 = scmp.ne.s32.totalorder %s102, %s103
      %p115 = scmp.eq.s32.totalorder %s30, 1
      %p116 = por %p114, %p115
      %p118 = scmp.ne.s32.totalorder %s103, %s117
      %p119 = scmp.eq.s32.totalorder %s30, 0
      %p120 = por %p118, %p119
      %s122 = sadd.s32 %s121, 1
      %p125 = scmp.eq.s32.totalorder %s24, 1
      %p126 = scmp.ne.s32.totalorder %s121, %s123
      %p127 = scmp.eq.s32.totalorder %s24, 0
      %p128 = por %p126, %p127
      %p129 = scmp.ne.s32.totalorder %s121, %s123
      %p130 = scmp.eq.s32.totalorder %s29, 1
      %p131 = por %p129, %p130
      %p132 = scmp.ne.s32.totalorder %s123, %s124
      %p133 = scmp.eq.s32.totalorder %s29, 0
      %p134 = por %p132, %p133
      %p135 = scmp.ne.s32.totalorder %s123, %s124
      %p136 = scmp.eq.s32.totalorder %s30, 1
      %p137 = por %p135, %p136
      %p139 = scmp.ne.s32.totalorder %s124, %s138
      %p140 = scmp.eq.s32.totalorder %s30, 0
      %p141 = por %p139, %p140
      %s143 = sadd.s32 %s142, 1
      %p146 = scmp.eq.s32.totalorder %s24, 1
      %p147 = scmp.ne.s32.totalorder %s142, %s144
      %p148 = scmp.eq.s32.totalorder %s24, 0
      %p149 = por %p147, %p148
      %p150 = scmp.ne.s32.totalorder %s142, %s144
      %p151 = scmp.eq.s32.totalorder %s29, 1
      %p152 = por %p150, %p151
      %p153 = scmp.ne.s32.totalorder %s144, %s145
      %p154 = scmp.eq.s32.totalorder %s29, 0
      %p155 = por %p153, %p154
      %p156 = scmp.ne.s32.totalorder %s144, %s145
      %p157 = scmp.eq.s32.totalorder %s30, 1
      %p158 = por %p156, %p157
      %p160 = scmp.ne.s32.totalorder %s145, %s159
      %p161 = scmp.eq.s32.totalorder %s30, 0
      %p162 = por %p160, %p161
      %s164 = sadd.s32 %s163, 1
      %p167 = scmp.eq.s32.totalorder %s24, 1
      %p168 = scmp.ne.s32.totalorder %s163, %s165
      %p169 = scmp.eq.s32.totalorder %s24, 0
      %p170 = por %p168, %p169
      %p171 = scmp.ne.s32.totalorder %s163, %s165
      %p172 = scmp.eq.s32.totalorder %s29, 1
      %p173 = por %p171, %p172
      %p174 = scmp.ne.s32.totalorder %s165, %s166
      %p175 = scmp.eq.s32.totalorder %s29, 0
      %p176 = por %p174, %p175
      %p177 = scmp.ne.s32.totalorder %s165, %s166
      %p178 = scmp.eq.s32.totalorder %s30, 1
      %p179 = por %p177, %p178
      %p181 = scmp.ne.s32.totalorder %s166, %s180
      %p182 = scmp.eq.s32.totalorder %s30, 0
      %p183 = por %p181, %p182
      %s185 = sadd.s32 %s184, 1
      %p188 = scmp.eq.s32.totalorder %s24, 1
      %p189 = scmp.ne.s32.totalorder %s184, %s186
      %p190 = scmp.eq.s32.totalorder %s24, 0
      %p191 = por %p189, %p190
      %p192 = scmp.ne.s32.totalorder %s184, %s186
      %p193 = scmp.eq.s32.totalorder %s29, 1
      %p194 = por %p192, %p193
      %p195 = scmp.ne.s32.totalorder %s186, %s187
      %p196 = scmp.eq.s32.totalorder %s29, 0
      %p197 = por %p195, %p196
      %p198 = scmp.ne.s32.totalorder %s186, %s187
      %p199 = scmp.eq.s32.totalorder %s30, 1
      %p200 = por %p198, %p199
      %p202 = scmp.ne.s32.totalorder %s187, %s201
      %p203 = scmp.eq.s32.totalorder %s30, 0
      %p204 = por %p202, %p203
      %s206 = sadd.s32 %s205, 1
      %p209 = scmp.eq.s32.totalorder %s24, 1
      %p210 = scmp.ne.s32.totalorder %s205, %s207
      %p211 = scmp.eq.s32.totalorder %s24, 0
      %p212 = por %p210, %p211
      %p213 = scmp.ne.s32.totalorder %s205, %s207
      %p214 = scmp.eq.s32.totalorder %s29, 1
      %p215 = por %p213, %p214
      %p216 = scmp.ne.s32.totalorder %s207, %s208
      %p217 = scmp.eq.s32.totalorder %s29, 0
      %p218 = por %p216, %p217
      %p219 = scmp.ne.s32.totalorder %s207, %s208
      %p220 = scmp.eq.s32.totalorder %s30, 1
      %p221 = por %p219, %p220
      %p223 = scmp.ne.s32.totalorder %s208, %s222
      %p224 = scmp.eq.s32.totalorder %s30, 0
      %p225 = por %p223, %p224
      %s227 = sadd.s32 %s226, 1
      %p230 = scmp.eq.s32.totalorder %s24, 1
      %p231 = scmp.ne.s32.totalorder %s226, %s228
      %p232 = scmp.eq.s32.totalorder %s24, 0
      %p233 = por %p231, %p232
      %p234 = scmp.ne.s32.totalorder %s226, %s228
      %p235 = scmp.eq.s32.totalorder %s29, 1
      %p236 = por %p234, %p235
      %p237 = scmp.ne.s32.totalorder %s228, %s229
      %p238 = scmp.eq.s32.totalorder %s29, 0
      %p239 = por %p237, %p238
      %p240 = scmp.ne.s32.totalorder %s228, %s229
      %p241 = scmp.eq.s32.totalorder %s30, 1
      %p242 = por %p240, %p241
      %p244 = scmp.ne.s32.totalorder %s229, %s243
      %p245 = scmp.eq.s32.totalorder %s30, 0
      %p246 = por %p244, %p245
      %s248 = sadd.s32 %s247, 1
      %p251 = scmp.eq.s32.totalorder %s24, 1
      %p252 = scmp.ne.s32.totalorder %s247, %s249
      %p253 = scmp.eq.s32.totalorder %s24, 0
      %p254 = por %p252, %p253
      %p255 = scmp.ne.s32.totalorder %s247, %s249
      %p256 = scmp.eq.s32.totalorder %s29, 1
      %p257 = por %p255, %p256
      %p258 = scmp.ne.s32.totalorder %s249, %s250
      %p259 = scmp.eq.s32.totalorder %s29, 0
      %p260 = por %p258, %p259
      %p261 = scmp.ne.s32.totalorder %s249, %s250
      %p262 = scmp.eq.s32.totalorder %s30, 1
      %p263 = por %p261, %p262
      %p265 = scmp.ne.s32.totalorder %s250, %s264
      %p266 = scmp.eq.s32.totalorder %s30, 0
      %p267 = por %p265, %p266
      %s269 = sadd.s32 %s268, 1
      %p272 = scmp.eq.s32.totalorder %s24, 1
      %p273 = scmp.ne.s32.totalorder %s268, %s270
      %p274 = scmp.eq.s32.totalorder %s24, 0
      %p275 = por %p273, %p274
      %p276 = scmp.ne.s32.totalorder %s268, %s270
      %p277 = scmp.eq.s32.totalorder %s29, 1
      %p278 = por %p276, %p277
      %p279 = scmp.ne.s32.totalorder %s270, %s271
      %p280 = scmp.eq.s32.totalorder %s29, 0
      %p281 = por %p279, %p280
      %p282 = scmp.ne.s32.totalorder %s270, %s271
      %p283 = scmp.eq.s32.totalorder %s30, 1
      %p284 = por %p282, %p283
      %p286 = scmp.ne.s32.totalorder %s271, %s285
      %p287 = scmp.eq.s32.totalorder %s30, 0
      %p288 = por %p286, %p287
      %s290 = sadd.s32 %s289, 1
      %p293 = scmp.eq.s32.totalorder %s24, 1
      %p294 = scmp.ne.s32.totalorder %s289, %s291
      %p295 = scmp.eq.s32.totalorder %s24, 0
      %p296 = por %p294, %p295
      %p297 = scmp.ne.s32.totalorder %s289, %s291
      %p298 = scmp.eq.s32.totalorder %s29, 1
      %p299 = por %p297, %p298
      %p300 = scmp.ne.s32.totalorder %s291, %s292
      %p301 = scmp.eq.s32.totalorder %s29, 0
      %p302 = por %p300, %p301
      %p303 = scmp.ne.s32.totalorder %s291, %s292
      %p304 = scmp.eq.s32.totalorder %s30, 1
      %p305 = por %p303, %p304
      %p307 = scmp.ne.s32.totalorder %s292, %s306
      %p308 = scmp.eq.s32.totalorder %s30, 0
      %p309 = por %p307, %p308
      %s310 = ssub.s32 %s24, %s31
      %p311 = scmp.eq.s32.totalorder %s310, 0
      %s313 = sadd.s32 %s312, 1
      %s314 = scalar_select %p311, %s312, %s313
      %p317 = pneg %p311
      %p318 = scmp.eq.s32.totalorder %s24, 1
      %p319 = por %p317, %p318
      %p320 = scmp.ne.s32.totalorder %s312, %s315
      %p321 = scmp.eq.s32.totalorder %s24, 0
      %p322 = por %p320, %p321
      %p323 = scmp.ne.s32.totalorder %s312, %s315
      %p324 = scmp.eq.s32.totalorder %s29, 1
      %p325 = por %p323, %p324
      %p326 = scmp.ne.s32.totalorder %s315, %s316
      %p327 = scmp.eq.s32.totalorder %s29, 0
      %p328 = por %p326, %p327
      %p329 = scmp.ne.s32.totalorder %s315, %s316
      %p330 = scmp.eq.s32.totalorder %s30, 1
      %p331 = por %p329, %p330
      %p333 = scmp.ne.s32.totalorder %s316, %s332
      %p334 = scmp.eq.s32.totalorder %s30, 0
      %p335 = por %p333, %p334
      %p336 = scmp.le.s32.totalorder 1, %s24
      %p337 = scmp.lt.s32.totalorder %s24, 3
      %p338 = pnand %p336, %p337
      %p339 = pneg %p338
      // Predicated region
      $region9: #{features12_nn_forward.1} parent=5 // pred_check
        _
      $region10: #{features12_nn_forward.1} parent=5 // pred_check_branch
        %341 = sbr.rel (%p338) target = $region12
      $region11: #{features12_nn_forward.1} parent=5 // pred_region
        %s342 = ssub.s32 %s24, 1
        // Predicated region
        $region13: #{features12_nn_forward.1} parent=11 // pred_check
          %p343 = pneg %p71
        $region14: #{features12_nn_forward.1} parent=11 // pred_check_branch
          %345 = sbr.rel (%p343) target = $region16
        $region15: #{features12_nn_forward.1} parent=11 // pred_region
          _
        $region16: #{features12_nn_forward.1} parent=11 // pred_fallthru
          _
        // Predicated region
        $region17: #{features12_nn_forward.1} parent=11 // pred_check
          %p346 = pneg %p92
        $region18: #{features12_nn_forward.1} parent=11 // pred_check_branch
          %348 = sbr.rel (%p346) target = $region20
        $region19: #{features12_nn_forward.1} parent=11 // pred_region
          _
        $region20: #{features12_nn_forward.1} parent=11 // pred_fallthru
          _
        // Predicated region
        $region21: #{features12_nn_forward.1} parent=11 // pred_check
          %p349 = pneg %p113
        $region22: #{features12_nn_forward.1} parent=11 // pred_check_branch
          %351 = sbr.rel (%p349) target = $region24
        $region23: #{features12_nn_forward.1} parent=11 // pred_region
          _
        $region24: #{features12_nn_forward.1} parent=11 // pred_fallthru
          _
        // Predicated region
        $region25: #{features12_nn_forward.1} parent=11 // pred_check
          %p352 = pneg %p134
        $region26: #{features12_nn_forward.1} parent=11 // pred_check_branch
          %354 = sbr.rel (%p352) target = $region28
        $region27: #{features12_nn_forward.1} parent=11 // pred_region
          _
        $region28: #{features12_nn_forward.1} parent=11 // pred_fallthru
          _
        // Predicated region
        $region29: #{features12_nn_forward.1} parent=11 // pred_check
          %p355 = pneg %p155
        $region30: #{features12_nn_forward.1} parent=11 // pred_check_branch
          %357 = sbr.rel (%p355) target = $region32
        $region31: #{features12_nn_forward.1} parent=11 // pred_region
          _
        $region32: #{features12_nn_forward.1} parent=11 // pred_fallthru
          _
        // Predicated region
        $region33: #{features12_nn_forward.1} parent=11 // pred_check
          %p358 = pneg %p176
        $region34: #{features12_nn_forward.1} parent=11 // pred_check_branch
          %360 = sbr.rel (%p358) target = $region36
        $region35: #{features12_nn_forward.1} parent=11 // pred_region
          _
        $region36: #{features12_nn_forward.1} parent=11 // pred_fallthru
          _
        // Predicated region
        $region37: #{features12_nn_forward.1} parent=11 // pred_check
          %p361 = pneg %p197
        $region38: #{features12_nn_forward.1} parent=11 // pred_check_branch
          %363 = sbr.rel (%p361) target = $region40
        $region39: #{features12_nn_forward.1} parent=11 // pred_region
          _
        $region40: #{features12_nn_forward.1} parent=11 // pred_fallthru
          _
        // Predicated region
        $region41: #{features12_nn_forward.1} parent=11 // pred_check
          %p364 = pneg %p218
        $region42: #{features12_nn_forward.1} parent=11 // pred_check_branch
          %366 = sbr.rel (%p364) target = $region44
        $region43: #{features12_nn_forward.1} parent=11 // pred_region
          _
        $region44: #{features12_nn_forward.1} parent=11 // pred_fallthru
          _
        // Predicated region
        $region45: #{features12_nn_forward.1} parent=11 // pred_check
          %p367 = pneg %p239
        $region46: #{features12_nn_forward.1} parent=11 // pred_check_branch
          %369 = sbr.rel (%p367) target = $region48
        $region47: #{features12_nn_forward.1} parent=11 // pred_region
          _
        $region48: #{features12_nn_forward.1} parent=11 // pred_fallthru
          _
        // Predicated region
        $region49: #{features12_nn_forward.1} parent=11 // pred_check
          %p370 = pneg %p260
        $region50: #{features12_nn_forward.1} parent=11 // pred_check_branch
          %372 = sbr.rel (%p370) target = $region52
        $region51: #{features12_nn_forward.1} parent=11 // pred_region
          _
        $region52: #{features12_nn_forward.1} parent=11 // pred_fallthru
          _
        // Predicated region
        $region53: #{features12_nn_forward.1} parent=11 // pred_check
          %p373 = pneg %p281
        $region54: #{features12_nn_forward.1} parent=11 // pred_check_branch
          %375 = sbr.rel (%p373) target = $region56
        $region55: #{features12_nn_forward.1} parent=11 // pred_region
          _
        $region56: #{features12_nn_forward.1} parent=11 // pred_fallthru
          _
        // Predicated region
        $region57: #{features12_nn_forward.1} parent=11 // pred_check
          %p376 = pneg %p302
        $region58: #{features12_nn_forward.1} parent=11 // pred_check_branch
          %378 = sbr.rel (%p376) target = $region60
        $region59: #{features12_nn_forward.1} parent=11 // pred_region
          _
        $region60: #{features12_nn_forward.1} parent=11 // pred_fallthru
          _
      $region12: #{features12_nn_forward.1} parent=5 // pred_fallthru
        _
      %p379 = scmp.lt.s32.totalorder %s24, 2
      // Predicated region
      $region61: #{features12_nn_forward.1} parent=5 // pred_check
        %p380 = pneg %p379
      $region62: #{features12_nn_forward.1} parent=5 // pred_check_branch
        %382 = sbr.rel (%p380) target = $region64
      $region63: #{features12_nn_forward.1} parent=5 // pred_region
        // Predicated region
        $region65: #{features12_nn_forward.1} parent=63 // pred_check
          %p383 = pneg %p44
        $region66: #{features12_nn_forward.1} parent=63 // pred_check_branch
          %385 = sbr.rel (%p383) target = $region68
        $region67: #{features12_nn_forward.1} parent=63 // pred_region
          %s386 = smul.u32 64, %s24
          %s387 = ssub.s32 125, %s386
          %p388 = scmp.lt.s32.totalorder %s387, 64
          %s389 = scalar_select %p388, %s387, 64
          %s390 = smul.u32 128, %s389
          %p391 = scmp.lt.s32.totalorder %s386, 124
          %s392 = scalar_select %p391, %s386, 124
          %s393 = smul.addr %s392, 8
          %s394 = scalar_lea.vmem %s0, %s393
          %s395 = smul.u32 64, %s24
          %s396 = ssub.s32 125, %s395
          %p397 = scmp.lt.s32.totalorder %s396, 64
          %s398 = scalar_select %p397, %s396, 64
          %s399 = smul.u32 128, %s398
        $region68: #{features12_nn_forward.1} parent=63 // pred_fallthru
          _
      $region64: #{features12_nn_forward.1} parent=5 // pred_fallthru
        _
      %p400 = scmp.le.s32.totalorder 1, %s24
      %p401 = scmp.lt.s32.totalorder %s24, 3
      %p402 = pnand %p400, %p401
      %p403 = pneg %p402
      // Predicated region
      $region69: #{features12_nn_forward.1} parent=5 // pred_check
        _
      $region70: #{features12_nn_forward.1} parent=5 // pred_check_branch
        %405 = sbr.rel (%p402) target = $region72
      $region71: #{features12_nn_forward.1} parent=5 // pred_region
        %s406 = ssub.s32 %s24, 1
        %s407 = smul.u32 64, %s29
        %s408 = ssub.s32 125, %s407
        %p409 = scmp.lt.s32.totalorder %s408, 64
        %s410 = scalar_select %p409, %s408, 64
        %s411 = smul.u32 128, %s410
        %p412 = scmp.lt.s32.totalorder %s407, 124
        %s413 = scalar_select %p412, %s407, 124
        %s414 = smul.addr %s413, 8
        %s415 = scalar_lea.vmem %s0, %s414
        %p416 = pneg %p50
        %p417 = pneg %p47
        %p418 = pneg %p71
        %p419 = pneg %p68
        %p420 = pneg %p92
        %p421 = pneg %p89
        %p422 = pneg %p113
        %p423 = pneg %p110
        %p424 = pneg %p134
        %p425 = pneg %p131
        %p426 = pneg %p155
        %p427 = pneg %p152
        %p428 = pneg %p176
        %p429 = pneg %p173
        %p430 = pneg %p197
        %p431 = pneg %p194
        %p432 = pneg %p218
        %p433 = pneg %p215
        %p434 = pneg %p239
        %p435 = pneg %p236
        %p436 = pneg %p260
        %p437 = pneg %p257
        %p438 = pneg %p281
        %p439 = pneg %p278
        %p440 = pneg %p302
        %p441 = pneg %p299
        %p442 = pneg %p328
        %p443 = pneg %p325
        %s444 = sand.u32 %s315, 1
        %s445 = scalar_lea.sflag [#allocation4], %s444
        %s446 = sand.u32 %s315, 1
        %s447 = smul.addr %s446, 4
        %s448 = scalar_lea.vmem [#allocation3], %s447
        %s449 = smul.u32 64, %s29
        %s450 = ssub.s32 125, %s449
        %p451 = scmp.lt.s32.totalorder %s450, 64
        %s452 = scalar_select %p451, %s450, 64
        %s453 = smul.u32 128, %s452
        %p454 = scmp.lt.s32.totalorder %s449, 124
        %s455 = scalar_select %p454, %s449, 124
        %s456 = smul.addr %s455, 8
        %s457 = scalar_lea.vmem %s0, %s456
        %s458 = smul.u32 64, %s29
        %s459 = ssub.s32 125, %s458
        %p460 = scmp.lt.s32.totalorder %s459, 64
        %s461 = scalar_select %p460, %s459, 64
        %s462 = smul.u32 128, %s461
        %s463 = smul.u32 4, %s29
        %v464 = vld [vmem:[%s457] sm:$0xff]
        %v465 = vld [vmem:[%s457 + $0x8] sm:$0xff]
        %v466 = vld [vmem:[%s457 + $0x10] sm:$0xff]
        %v467 = vld [vmem:[%s457 + $0x18] sm:$0xff]
        %v468 = vld [vmem:[%s457 + $0x20] sm:$0xff]
        %v469 = vld [vmem:[%s457 + $0x28] sm:$0xff]
        %v470 = vld [vmem:[%s457 + $0x30] sm:$0xff]
        %v471 = vld [vmem:[%s457 + $0x38] sm:$0xff]
        %v472 = vld [vmem:[%s457 + $0x40] sm:$0xff]
        %v473 = vld [vmem:[%s457 + $0x48] sm:$0xff]
        %v474 = vld [vmem:[%s457 + $0x50] sm:$0xff]
        %v475 = vld [vmem:[%s457 + $0x58] sm:$0xff]
        %v476 = vld [vmem:[%s457 + $0x60] sm:$0xff]
        %v477 = vld [vmem:[%s457 + $0x68] sm:$0xff]
        %v478 = vld [vmem:[%s457 + $0x70] sm:$0xff]
        %v479 = vld [vmem:[%s457 + $0x78] sm:$0xff]
        %v480 = vld [vmem:[%s457 + $0x80] sm:$0xff]
        %v481 = vld [vmem:[%s457 + $0x88] sm:$0xff]
        %v482 = vld [vmem:[%s457 + $0x90] sm:$0xff]
        %v483 = vld [vmem:[%s457 + $0x98] sm:$0xff]
        %v484 = vld [vmem:[%s457 + $0xa0] sm:$0xff]
        %v485 = vld [vmem:[%s457 + $0xa8] sm:$0xff]
        %v486 = vld [vmem:[%s457 + $0xb0] sm:$0xff]
        %v487 = vld [vmem:[%s457 + $0xb8] sm:$0xff]
        %v488 = vld [vmem:[%s457 + $0xc0] sm:$0xff]
        %v489 = vld [vmem:[%s457 + $0xc8] sm:$0xff]
        %v490 = vld [vmem:[%s457 + $0xd0] sm:$0xff]
        %v491 = vld [vmem:[%s457 + $0xd8] sm:$0xff]
        %v492 = vld [vmem:[%s457 + $0xe0] sm:$0xff]
        %v493 = vld [vmem:[%s457 + $0xe8] sm:$0xff]
        %v494 = vld [vmem:[%s457 + $0xf0] sm:$0xff]
        %v495 = vld [vmem:[%s457 + $0xf8] sm:$0xff]
        %v496 = vld [vmem:[%s457 + $0x100] sm:$0xff]
        %v497 = vld [vmem:[%s457 + $0x108] sm:$0xff]
        %v498 = vld [vmem:[%s457 + $0x110] sm:$0xff]
        %v499 = vld [vmem:[%s457 + $0x118] sm:$0xff]
        %v500 = vld [vmem:[%s457 + $0x120] sm:$0xff]
        %v501 = vld [vmem:[%s457 + $0x128] sm:$0xff]
        %v502 = vld [vmem:[%s457 + $0x130] sm:$0xff]
        %v503 = vld [vmem:[%s457 + $0x138] sm:$0xff]
        %v504 = vld [vmem:[%s457 + $0x140] sm:$0xff]
        %v505 = vld [vmem:[%s457 + $0x148] sm:$0xff]
        %v506 = vld [vmem:[%s457 + $0x150] sm:$0xff]
        %v507 = vld [vmem:[%s457 + $0x158] sm:$0xff]
        %v508 = vld [vmem:[%s457 + $0x160] sm:$0xff]
        %v509 = vld [vmem:[%s457 + $0x168] sm:$0xff]
        %v510 = vld [vmem:[%s457 + $0x170] sm:$0xff]
        %v511 = vld [vmem:[%s457 + $0x178] sm:$0xff]
        %v512 = vld [vmem:[%s457 + $0x180] sm:$0xff]
        %v513 = vld [vmem:[%s457 + $0x188] sm:$0xff]
        %v514 = vld [vmem:[%s457 + $0x190] sm:$0xff]
        %v515 = vld [vmem:[%s457 + $0x198] sm:$0xff]
        %v516 = vld [vmem:[%s457 + $0x1a0] sm:$0xff]
        %v517 = vld [vmem:[%s457 + $0x1a8] sm:$0xff]
        %v518 = vld [vmem:[%s457 + $0x1b0] sm:$0xff]
        %v519 = vld [vmem:[%s457 + $0x1b8] sm:$0xff]
        %v520 = vld [vmem:[%s457 + $0x1c0] sm:$0xff]
        %v521 = vld [vmem:[%s457 + $0x1c8] sm:$0xff]
        %v522 = vld [vmem:[%s457 + $0x1d0] sm:$0xff]
        %v523 = vld [vmem:[%s457 + $0x1d8] sm:$0xff]
        %v524 = vld [vmem:[%s457 + $0x1e0] sm:$0xff]
        %v525 = vld [vmem:[%s457 + $0x1e8] sm:$0xff]
        %v526 = vld [vmem:[%s457 + $0x1f0] sm:$0xff]
        %v527 = vld [vmem:[%s457 + $0x1f8] sm:$0xff]
        %v528 = vld [vmem:[%s1] sm:$0xff]
        %v529 = vld [vmem:[%s1 + $0x8] sm:$0xff]
        %v530 = vld [vmem:[%s1 + $0x10] sm:$0xff]
        %v531 = vld [vmem:[%s2] sm:$0xff]
        %v532 = vld [vmem:[%s2 + $0x8] sm:$0xff]
        %v533 = vld [vmem:[%s2 + $0x10] sm:$0xff]
        %535 = vset.pattern.permute.xlu0 0
        %536 = vperm.xlu0 %535, %v531
        %v537 = vpop.permute.xlu0 %536
        %540 = vset.pattern.permute.xlu0 0
        %541 = vperm.xlu0 %540, %v532
        %v542 = vpop.permute.xlu0 %541
        %545 = vset.pattern.permute.xlu0 0
        %546 = vperm.xlu0 %545, %v533
        %v547 = vpop.permute.xlu0 %546
        %vm549 = vcmask 97280
        %v551 = vsel %vm549, %v528, 0
        %v554 = vsel %vm549, %v529, 0
        %v557 = vsel %vm549, %v530, 0
        %v560 = vsel %vm549, %v464, 0
        %v563 = vsel %vm549, %v465, 0
        %v566 = vsel %vm549, %v466, 0
        %v569 = vsel %vm549, %v467, 0
        %v572 = vsel %vm549, %v468, 0
        %v575 = vsel %vm549, %v469, 0
        %v578 = vsel %vm549, %v470, 0
        %v581 = vsel %vm549, %v471, 0
        %v584 = vsel %vm549, %v472, 0
        %v587 = vsel %vm549, %v473, 0
        %v590 = vsel %vm549, %v474, 0
        %v593 = vsel %vm549, %v475, 0
        %v596 = vsel %vm549, %v476, 0
        %v599 = vsel %vm549, %v477, 0
        %v602 = vsel %vm549, %v478, 0
        %v605 = vsel %vm549, %v479, 0
        %v608 = vsel %vm549, %v480, 0
        %v611 = vsel %vm549, %v481, 0
        %v614 = vsel %vm549, %v482, 0
        %v617 = vsel %vm549, %v483, 0
        %v620 = vsel %vm549, %v484, 0
        %v623 = vsel %vm549, %v485, 0
        %v626 = vsel %vm549, %v486, 0
        %v629 = vsel %vm549, %v487, 0
        %v632 = vsel %vm549, %v488, 0
        %v635 = vsel %vm549, %v489, 0
        %v638 = vsel %vm549, %v490, 0
        %v641 = vsel %vm549, %v491, 0
        %v644 = vsel %vm549, %v492, 0
        %v647 = vsel %vm549, %v493, 0
        %v650 = vsel %vm549, %v494, 0
        %v653 = vsel %vm549, %v495, 0
        %v656 = vsel %vm549, %v496, 0
        %v659 = vsel %vm549, %v497, 0
        %v662 = vsel %vm549, %v498, 0
        %v665 = vsel %vm549, %v499, 0
        %v668 = vsel %vm549, %v500, 0
        %v671 = vsel %vm549, %v501, 0
        %v674 = vsel %vm549, %v502, 0
        %v677 = vsel %vm549, %v503, 0
        %v680 = vsel %vm549, %v504, 0
        %v683 = vsel %vm549, %v505, 0
        %v686 = vsel %vm549, %v506, 0
        %v689 = vsel %vm549, %v507, 0
        %v692 = vsel %vm549, %v508, 0
        %v695 = vsel %vm549, %v509, 0
        %v698 = vsel %vm549, %v510, 0
        %v701 = vsel %vm549, %v511, 0
        %v704 = vsel %vm549, %v512, 0
        %v707 = vsel %vm549, %v513, 0
        %v710 = vsel %vm549, %v514, 0
        %v713 = vsel %vm549, %v515, 0
        %v716 = vsel %vm549, %v516, 0
        %v719 = vsel %vm549, %v517, 0
        %v722 = vsel %vm549, %v518, 0
        %v725 = vsel %vm549, %v519, 0
        %v728 = vsel %vm549, %v520, 0
        %v731 = vsel %vm549, %v521, 0
        %v734 = vsel %vm549, %v522, 0
        %v737 = vsel %vm549, %v523, 0
        %v740 = vsel %vm549, %v524, 0
        %v743 = vsel %vm549, %v525, 0
        %v746 = vsel %vm549, %v526, 0
        %v749 = vsel %vm549, %v527, 0
        %751 = vmatprep.subr.mxu0 0.0
        %752 = vmatpush1.xpose.msra.mxu0 %v605
        %753 = vmatprep.subr.mxu0 0.0
        %754 = vmatpush1.xpose.msra.mxu0 %v602
        %755 = vmatprep.subr.mxu0 0.0
        %756 = vmatpush1.xpose.msra.mxu0 %v599
        %757 = vmatprep.subr.mxu0 0.0
        %758 = vmatpush1.xpose.msra.mxu0 %v596
        %759 = vmatprep.subr.mxu0 0.0
        %760 = vmatpush1.xpose.msra.mxu0 %v593
        %761 = vmatprep.subr.mxu0 0.0
        %762 = vmatpush1.xpose.msra.mxu0 %v590
        %763 = vmatprep.subr.mxu0 0.0
        %764 = vmatpush1.xpose.msra.mxu0 %v587
        %765 = vmatprep.subr.mxu0 0.0
        %766 = vmatpush1.xpose.msra.mxu0 %v584
        %767 = vmatprep.subr.mxu0 0.0
        %768 = vmatpush1.xpose.msra.mxu0 %v581
        %769 = vmatprep.subr.mxu0 0.0
        %770 = vmatpush1.xpose.msra.mxu0 %v578
        %771 = vmatprep.subr.mxu0 0.0
        %772 = vmatpush1.xpose.msra.mxu0 %v575
        %773 = vmatprep.subr.mxu0 0.0
        %774 = vmatpush1.xpose.msra.mxu0 %v572
        %775 = vmatprep.subr.mxu0 0.0
        %776 = vmatpush1.xpose.msra.mxu0 %v569
        %777 = vmatprep.subr.mxu0 0.0
        %778 = vmatpush1.xpose.msra.mxu0 %v566
        %779 = vmatprep.subr.mxu0 0.0
        %780 = vmatpush1.xpose.msra.mxu0 %v563
        %781 = vmatprep.subr.mxu0 0.0
        %782 = vmatpush1.xpose.msra.mxu0 %v560
        %783 = vmatprep.subr.mxu0 0.0
        %784 = vmatpush2.xpose.msra.mxu0 %v653
        %785 = vmatprep.subr.mxu0 0.0
        %786 = vmatpush2.xpose.msra.mxu0 %v650
        %787 = vmatprep.subr.mxu0 0.0
        %788 = vmatpush2.xpose.msra.mxu0 %v647
        %789 = vmatprep.subr.mxu0 0.0
        %790 = vmatpush2.xpose.msra.mxu0 %v644
        %791 = vmatprep.subr.mxu0 0.0
        %792 = vmatpush2.xpose.msra.mxu0 %v641
        %793 = vmatprep.subr.mxu0 0.0
        %794 = vmatpush2.xpose.msra.mxu0 %v638
        %795 = vmatprep.subr.mxu0 0.0
        %796 = vmatpush2.xpose.msra.mxu0 %v635
        %797 = vmatprep.subr.mxu0 0.0
        %798 = vmatpush2.xpose.msra.mxu0 %v632
        %799 = vmatprep.subr.mxu0 0.0
        %800 = vmatpush2.xpose.msra.mxu0 %v629
        %801 = vmatprep.subr.mxu0 0.0
        %802 = vmatpush2.xpose.msra.mxu0 %v626
        %803 = vmatprep.subr.mxu0 0.0
        %804 = vmatpush2.xpose.msra.mxu0 %v623
        %805 = vmatprep.subr.mxu0 0.0
        %806 = vmatpush2.xpose.msra.mxu0 %v620
        %807 = vmatprep.subr.mxu0 0.0
        %808 = vmatpush2.xpose.msra.mxu0 %v617
        %809 = vmatprep.subr.mxu0 0.0
        %810 = vmatpush2.xpose.msra.mxu0 %v614
        %811 = vmatprep.subr.mxu0 0.0
        %812 = vmatpush2.xpose.msra.mxu0 %v611
        %813 = vmatprep.subr.mxu0 0.0
        %814 = vmatpush2.xpose.msra.mxu0 %v608
        %815 = vmatprep.mubr.f32.mxu0 0.0
        %816 = vmatmul.mubr.f32.gmra.mxu0 %v551
        %v817 = vpop.f32.mrf.mxu0
        %v818 = vadd.f32 %v537, %v817
        %v819 = vpop.f32.mrf.mxu0
        %v820 = vadd.f32 %v537, %v819
        %821 = vmatprep.mubr.f32.mxu0 0.0
        %822 = vmatmul.mubr.f32.gmra.mxu0 %v554
        %v823 = vpop.f32.mrf.mxu0
        %v824 = vadd.f32 %v542, %v823
        %v825 = vpop.f32.mrf.mxu0
        %v826 = vadd.f32 %v542, %v825
        %827 = vmatprep.mubr.f32.mxu0 0.0
        %828 = vmatmul.mubr.f32.gmra.mxu0 %v557
        %v829 = vpop.f32.mrf.mxu0
        %v830 = vadd.f32 %v547, %v829
        %v831 = vpop.f32.mrf.mxu0
        %v832 = vadd.f32 %v547, %v831
        %833 = vdwg.mxu0
        %834 = vmatprep.subr.mxu0 0.0
        %835 = vmatpush1.xpose.msra.mxu0 %v701
        %836 = vmatprep.subr.mxu0 0.0
        %837 = vmatpush1.xpose.msra.mxu0 %v698
        %838 = vmatprep.subr.mxu0 0.0
        %839 = vmatpush1.xpose.msra.mxu0 %v695
        %840 = vmatprep.subr.mxu0 0.0
        %841 = vmatpush1.xpose.msra.mxu0 %v692
        %842 = vmatprep.subr.mxu0 0.0
        %843 = vmatpush1.xpose.msra.mxu0 %v689
        %844 = vmatprep.subr.mxu0 0.0
        %845 = vmatpush1.xpose.msra.mxu0 %v686
        %846 = vmatprep.subr.mxu0 0.0
        %847 = vmatpush1.xpose.msra.mxu0 %v683
        %848 = vmatprep.subr.mxu0 0.0
        %849 = vmatpush1.xpose.msra.mxu0 %v680
        %850 = vmatprep.subr.mxu0 0.0
        %851 = vmatpush1.xpose.msra.mxu0 %v677
        %852 = vmatprep.subr.mxu0 0.0
        %853 = vmatpush1.xpose.msra.mxu0 %v674
        %854 = vmatprep.subr.mxu0 0.0
        %855 = vmatpush1.xpose.msra.mxu0 %v671
        %856 = vmatprep.subr.mxu0 0.0
        %857 = vmatpush1.xpose.msra.mxu0 %v668
        %858 = vmatprep.subr.mxu0 0.0
        %859 = vmatpush1.xpose.msra.mxu0 %v665
        %860 = vmatprep.subr.mxu0 0.0
        %861 = vmatpush1.xpose.msra.mxu0 %v662
        %862 = vmatprep.subr.mxu0 0.0
        %863 = vmatpush1.xpose.msra.mxu0 %v659
        %864 = vmatprep.subr.mxu0 0.0
        %865 = vmatpush1.xpose.msra.mxu0 %v656
        %866 = vmatprep.subr.mxu0 0.0
        %867 = vmatpush2.xpose.msra.mxu0 %v749
        %868 = vmatprep.subr.mxu0 0.0
        %869 = vmatpush2.xpose.msra.mxu0 %v746
        %870 = vmatprep.subr.mxu0 0.0
        %871 = vmatpush2.xpose.msra.mxu0 %v743
        %872 = vmatprep.subr.mxu0 0.0
        %873 = vmatpush2.xpose.msra.mxu0 %v740
        %874 = vmatprep.subr.mxu0 0.0
        %875 = vmatpush2.xpose.msra.mxu0 %v737
        %876 = vmatprep.subr.mxu0 0.0
        %877 = vmatpush2.xpose.msra.mxu0 %v734
        %878 = vmatprep.subr.mxu0 0.0
        %879 = vmatpush2.xpose.msra.mxu0 %v731
        %880 = vmatprep.subr.mxu0 0.0
        %881 = vmatpush2.xpose.msra.mxu0 %v728
        %882 = vmatprep.subr.mxu0 0.0
        %883 = vmatpush2.xpose.msra.mxu0 %v725
        %884 = vmatprep.subr.mxu0 0.0
        %885 = vmatpush2.xpose.msra.mxu0 %v722
        %886 = vmatprep.subr.mxu0 0.0
        %887 = vmatpush2.xpose.msra.mxu0 %v719
        %888 = vmatprep.subr.mxu0 0.0
        %889 = vmatpush2.xpose.msra.mxu0 %v716
        %890 = vmatprep.subr.mxu0 0.0
        %891 = vmatpush2.xpose.msra.mxu0 %v713
        %892 = vmatprep.subr.mxu0 0.0
        %893 = vmatpush2.xpose.msra.mxu0 %v710
        %894 = vmatprep.subr.mxu0 0.0
        %895 = vmatpush2.xpose.msra.mxu0 %v707
        %896 = vmatprep.subr.mxu0 0.0
        %897 = vmatpush2.xpose.msra.mxu0 %v704
        %898 = vmatprep.mubr.f32.mxu0 0.0
        %899 = vmatmul.mubr.f32.gmra.mxu0 %v551
        %v900 = vpop.f32.mrf.mxu0
        %v901 = vadd.f32 %v537, %v900
        %v902 = vpop.f32.mrf.mxu0
        %v903 = vadd.f32 %v537, %v902
        %904 = vmatprep.mubr.f32.mxu0 0.0
        %905 = vmatmul.mubr.f32.gmra.mxu0 %v554
        %v906 = vpop.f32.mrf.mxu0
        %v907 = vadd.f32 %v542, %v906
        %v908 = vpop.f32.mrf.mxu0
        %v909 = vadd.f32 %v542, %v908
        %910 = vmatprep.mubr.f32.mxu0 0.0
        %911 = vmatmul.mubr.f32.gmra.mxu0 %v557
        %v912 = vpop.f32.mrf.mxu0
        %v913 = vadd.f32 %v547, %v912
        %v914 = vpop.f32.mrf.mxu0
        %v915 = vadd.f32 %v547, %v914
        %916 = vdwg.mxu0
        %v917 = vmin.f32 %v818, 40.0
        %v918 = vmin.f32 %v820, 40.0
        %v919 = vmin.f32 %v901, 40.0
        %v920 = vmin.f32 %v903, 40.0
        %v921 = vmin.f32 %v824, 40.0
        %v922 = vmin.f32 %v826, 40.0
        %v923 = vmin.f32 %v907, 40.0
        %v924 = vmin.f32 %v909, 40.0
        %v925 = vmin.f32 %v830, 40.0
        %v926 = vmin.f32 %v832, 40.0
        %v927 = vmin.f32 %v913, 40.0
        %v928 = vmin.f32 %v915, 40.0
        %v929 = vmul.f32 %v917, 1.442695
        %v930 = vpow.pop %v929
        %v931 = vmul.f32 %v918, 1.442695
        %v932 = vpow.pop %v931
        %v933 = vmul.f32 %v919, 1.442695
        %v934 = vpow.pop %v933
        %v935 = vmul.f32 %v920, 1.442695
        %v936 = vpow.pop %v935
        %v937 = vmul.f32 %v921, 1.442695
        %v938 = vpow.pop %v937
        %v939 = vmul.f32 %v922, 1.442695
        %v940 = vpow.pop %v939
        %v941 = vmul.f32 %v923, 1.442695
        %v942 = vpow.pop %v941
        %v943 = vmul.f32 %v924, 1.442695
        %v944 = vpow.pop %v943
        %v945 = vmul.f32 %v925, 1.442695
        %v946 = vpow.pop %v945
        %v947 = vmul.f32 %v926, 1.442695
        %v948 = vpow.pop %v947
        %v949 = vmul.f32 %v927, 1.442695
        %v950 = vpow.pop %v949
        %v951 = vmul.f32 %v928, 1.442695
        %v952 = vpow.pop %v951
        %v953 = vadd.f32 %v930, 2.0
        %v954 = vadd.f32 %v932, 2.0
        %v955 = vadd.f32 %v934, 2.0
        %v956 = vadd.f32 %v936, 2.0
        %v957 = vadd.f32 %v938, 2.0
        %v958 = vadd.f32 %v940, 2.0
        %v959 = vadd.f32 %v942, 2.0
        %v960 = vadd.f32 %v944, 2.0
        %v961 = vadd.f32 %v946, 2.0
        %v962 = vadd.f32 %v948, 2.0
        %v963 = vadd.f32 %v950, 2.0
        %v964 = vadd.f32 %v952, 2.0
        %v965 = vmul.f32 %v930, %v953
        %v966 = vmul.f32 %v932, %v954
        %v967 = vmul.f32 %v934, %v955
        %v968 = vmul.f32 %v936, %v956
        %v969 = vmul.f32 %v938, %v957
        %v970 = vmul.f32 %v940, %v958
        %v971 = vmul.f32 %v942, %v959
        %v972 = vmul.f32 %v944, %v960
        %v973 = vmul.f32 %v946, %v961
        %v974 = vmul.f32 %v948, %v962
        %v975 = vmul.f32 %v950, %v963
        %v976 = vmul.f32 %v952, %v964
        %v977 = vadd.f32 %v965, 2.0
        %v978 = vadd.f32 %v966, 2.0
        %v979 = vadd.f32 %v967, 2.0
        %v980 = vadd.f32 %v968, 2.0
        %v981 = vadd.f32 %v969, 2.0
        %v982 = vadd.f32 %v970, 2.0
        %v983 = vadd.f32 %v971, 2.0
        %v984 = vadd.f32 %v972, 2.0
        %v985 = vadd.f32 %v973, 2.0
        %v986 = vadd.f32 %v974, 2.0
        %v987 = vadd.f32 %v975, 2.0
        %v988 = vadd.f32 %v976, 2.0
        %v989 = vrcp.pop %v977
        %v990 = vrcp.pop %v978
        %v991 = vrcp.pop %v979
        %v992 = vrcp.pop %v980
        %v993 = vrcp.pop %v981
        %v994 = vrcp.pop %v982
        %v995 = vrcp.pop %v983
        %v996 = vrcp.pop %v984
        %v997 = vrcp.pop %v985
        %v998 = vrcp.pop %v986
        %v999 = vrcp.pop %v987
        %v1000 = vrcp.pop %v988
        %v1001 = vmul.f32 %v977, %v989
        %v1002 = vmul.f32 %v978, %v990
        %v1003 = vmul.f32 %v979, %v991
        %v1004 = vmul.f32 %v980, %v992
        %v1005 = vmul.f32 %v981, %v993
        %v1006 = vmul.f32 %v982, %v994
        %v1007 = vmul.f32 %v983, %v995
        %v1008 = vmul.f32 %v984, %v996
        %v1009 = vmul.f32 %v985, %v997
        %v1010 = vmul.f32 %v986, %v998
        %v1011 = vmul.f32 %v987, %v999
        %v1012 = vmul.f32 %v988, %v1000
        %v1013 = vsub.f32 2.0, %v1001
        %v1014 = vsub.f32 2.0, %v1002
        %v1015 = vsub.f32 2.0, %v1003
        %v1016 = vsub.f32 2.0, %v1004
        %v1017 = vsub.f32 2.0, %v1005
        %v1018 = vsub.f32 2.0, %v1006
        %v1019 = vsub.f32 2.0, %v1007
        %v1020 = vsub.f32 2.0, %v1008
        %v1021 = vsub.f32 2.0, %v1009
        %v1022 = vsub.f32 2.0, %v1010
        %v1023 = vsub.f32 2.0, %v1011
        %v1024 = vsub.f32 2.0, %v1012
        %v1025 = vmul.f32 %v989, %v1013
        %v1026 = vmul.f32 %v990, %v1014
        %v1027 = vmul.f32 %v991, %v1015
        %v1028 = vmul.f32 %v992, %v1016
        %v1029 = vmul.f32 %v993, %v1017
        %v1030 = vmul.f32 %v994, %v1018
        %v1031 = vmul.f32 %v995, %v1019
        %v1032 = vmul.f32 %v996, %v1020
        %v1033 = vmul.f32 %v997, %v1021
        %v1034 = vmul.f32 %v998, %v1022
        %v1035 = vmul.f32 %v999, %v1023
        %v1036 = vmul.f32 %v1000, %v1024
        %v1037 = vmul.f32 %v818, %v965
        %v1038 = vmul.f32 %v820, %v966
        %v1039 = vmul.f32 %v901, %v967
        %v1040 = vmul.f32 %v903, %v968
        %v1041 = vmul.f32 %v824, %v969
        %v1042 = vmul.f32 %v826, %v970
        %v1043 = vmul.f32 %v907, %v971
        %v1044 = vmul.f32 %v909, %v972
        %v1045 = vmul.f32 %v830, %v973
        %v1046 = vmul.f32 %v832, %v974
        %v1047 = vmul.f32 %v913, %v975
        %v1048 = vmul.f32 %v915, %v976
        %v1049 = vmul.f32 %v1037, %v1025
        %v1050 = vmul.f32 %v1038, %v1026
        %v1051 = vmul.f32 %v1039, %v1027
        %v1052 = vmul.f32 %v1040, %v1028
        %v1053 = vmul.f32 %v1041, %v1029
        %v1054 = vmul.f32 %v1042, %v1030
        %v1055 = vmul.f32 %v1043, %v1031
        %v1056 = vmul.f32 %v1044, %v1032
        %v1057 = vmul.f32 %v1045, %v1033
        %v1058 = vmul.f32 %v1046, %v1034
        %v1059 = vmul.f32 %v1047, %v1035
        %v1060 = vmul.f32 %v1048, %v1036
        %v1061 = vld [vmem:[%s3] sm:$0xff]
        %v1062 = vld [vmem:[%s3 + $0x8] sm:$0xff]
        %v1063 = vld [vmem:[%s3 + $0x10] sm:$0xff]
        %v1064 = vld [vmem:[%s3 + $0x18] sm:$0xff]
        %v1065 = vld [vmem:[%s3 + $0x20] sm:$0xff]
        %v1066 = vld [vmem:[%s3 + $0x28] sm:$0xff]
        %v1067 = vld [vmem:[%s4] sm:$0xff]
        %v1068 = vld [vmem:[%s4 + $0x8] sm:$0xff]
        %v1069 = vld [vmem:[%s4 + $0x10] sm:$0xff]
        %v1070 = vld [vmem:[%s4 + $0x18] sm:$0xff]
        %v1071 = vld [vmem:[%s4 + $0x20] sm:$0xff]
        %v1072 = vld [vmem:[%s4 + $0x28] sm:$0xff]
        %1074 = vset.pattern.permute.xlu0 0
        %1075 = vperm.xlu0 %1074, %v1067
        %v1076 = vpop.permute.xlu0 %1075
        %1079 = vset.pattern.permute.xlu0 0
        %1080 = vperm.xlu0 %1079, %v1068
        %v1081 = vpop.permute.xlu0 %1080
        %1084 = vset.pattern.permute.xlu0 0
        %1085 = vperm.xlu0 %1084, %v1069
        %v1086 = vpop.permute.xlu0 %1085
        %1089 = vset.pattern.permute.xlu0 0
        %1090 = vperm.xlu0 %1089, %v1070
        %v1091 = vpop.permute.xlu0 %1090
        %1094 = vset.pattern.permute.xlu0 0
        %1095 = vperm.xlu0 %1094, %v1071
        %v1096 = vpop.permute.xlu0 %1095
        %1099 = vset.pattern.permute.xlu0 0
        %1100 = vperm.xlu0 %1099, %v1072
        %v1101 = vpop.permute.xlu0 %1100
        %vm1103 = vcmask 195584
        %v1105 = vsel %vm1103, %v1061, 0
        %v1108 = vsel %vm1103, %v1062, 0
        %v1111 = vsel %vm1103, %v1063, 0
        %v1114 = vsel %vm1103, %v1064, 0
        %v1117 = vsel %vm1103, %v1065, 0
        %v1120 = vsel %vm1103, %v1066, 0
        %1122 = vmatprep.subr.mxu0 0.0
        %1123 = vmatpush1.msra.mxu0 0.0
        %1124 = vmatprep.subr.mxu0 0.0
        %1125 = vmatpush1.msra.mxu0 0.0
        %1126 = vmatprep.subr.mxu0 0.0
        %1127 = vmatpush1.msra.mxu0 0.0
        %1128 = vmatprep.subr.mxu0 0.0
        %1129 = vmatpush1.msra.mxu0 0.0
        %1130 = vmatprep.subr.mxu0 0.0
        %1131 = vmatpush1.msra.mxu0 0.0
        %1132 = vmatprep.subr.mxu0 0.0
        %1133 = vmatpush1.msra.mxu0 0.0
        %1134 = vmatprep.subr.mxu0 0.0
        %1135 = vmatpush1.msra.mxu0 0.0
        %1136 = vmatprep.subr.mxu0 0.0
        %1137 = vmatpush1.msra.mxu0 0.0
        %1138 = vmatprep.subr.mxu0 0.0
        %1139 = vmatpush1.msra.mxu0 0.0
        %1140 = vmatprep.subr.mxu0 0.0
        %1141 = vmatpush1.msra.mxu0 0.0
        %1142 = vmatprep.subr.mxu0 0.0
        %1143 = vmatpush1.msra.mxu0 0.0
        %1144 = vmatprep.subr.mxu0 0.0
        %1145 = vmatpush1.msra.mxu0 0.0
        %1146 = vmatprep.subr.mxu0 0.0
        %1147 = vmatpush1.msra.mxu0 0.0
        %1148 = vmatprep.subr.mxu0 %v1058
        %1149 = vmatpush1.msra.mxu0 %v1057
        %1150 = vmatprep.subr.mxu0 %v1054
        %1151 = vmatpush1.msra.mxu0 %v1053
        %1152 = vmatprep.subr.mxu0 %v1050
        %1153 = vmatpush1.msra.mxu0 %v1049
        %1154 = vmatprep.subr.mxu0 0.0
        %1155 = vmatpush2.msra.mxu0 0.0
        %1156 = vmatprep.subr.mxu0 0.0
        %1157 = vmatpush2.msra.mxu0 0.0
        %1158 = vmatprep.subr.mxu0 0.0
        %1159 = vmatpush2.msra.mxu0 0.0
        %1160 = vmatprep.subr.mxu0 0.0
        %1161 = vmatpush2.msra.mxu0 0.0
        %1162 = vmatprep.subr.mxu0 0.0
        %1163 = vmatpush2.msra.mxu0 0.0
        %1164 = vmatprep.subr.mxu0 0.0
        %1165 = vmatpush2.msra.mxu0 0.0
        %1166 = vmatprep.subr.mxu0 0.0
        %1167 = vmatpush2.msra.mxu0 0.0
        %1168 = vmatprep.subr.mxu0 0.0
        %1169 = vmatpush2.msra.mxu0 0.0
        %1170 = vmatprep.subr.mxu0 0.0
        %1171 = vmatpush2.msra.mxu0 0.0
        %1172 = vmatprep.subr.mxu0 0.0
        %1173 = vmatpush2.msra.mxu0 0.0
        %1174 = vmatprep.subr.mxu0 0.0
        %1175 = vmatpush2.msra.mxu0 0.0
        %1176 = vmatprep.subr.mxu0 0.0
        %1177 = vmatpush2.msra.mxu0 0.0
        %1178 = vmatprep.subr.mxu0 0.0
        %1179 = vmatpush2.msra.mxu0 0.0
        %1180 = vmatprep.subr.mxu0 0.0
        %1181 = vmatpush2.msra.mxu0 0.0
        %1182 = vmatprep.subr.mxu0 0.0
        %1183 = vmatpush2.msra.mxu0 0.0
        %1184 = vmatprep.subr.mxu0 0.0
        %1185 = vmatpush2.msra.mxu0 0.0
        %1186 = vmatprep.mubr.f32.mxu0 0.0
        %1187 = vmatmul.mubr.f32.gmra.mxu0 %v1105
        %v1188 = vpop.f32.mrf.mxu0
        %v1189 = vadd.f32 %v1076, %v1188
        %v1190 = vpop.f32.mrf.mxu0
        %v1191 = vadd.f32 %v1076, %v1190
        %1192 = vmatprep.mubr.f32.mxu0 0.0
        %1193 = vmatmul.mubr.f32.gmra.mxu0 %v1108
        %v1194 = vpop.f32.mrf.mxu0
        %v1195 = vadd.f32 %v1081, %v1194
        %v1196 = vpop.f32.mrf.mxu0
        %v1197 = vadd.f32 %v1081, %v1196
        %1198 = vmatprep.mubr.f32.mxu0 0.0
        %1199 = vmatmul.mubr.f32.gmra.mxu0 %v1111
        %v1200 = vpop.f32.mrf.mxu0
        %v1201 = vadd.f32 %v1086, %v1200
        %v1202 = vpop.f32.mrf.mxu0
        %v1203 = vadd.f32 %v1086, %v1202
        %1204 = vmatprep.mubr.f32.mxu0 0.0
        %1205 = vmatmul.mubr.f32.gmra.mxu0 %v1114
        %v1206 = vpop.f32.mrf.mxu0
        %v1207 = vadd.f32 %v1091, %v1206
        %v1208 = vpop.f32.mrf.mxu0
        %v1209 = vadd.f32 %v1091, %v1208
        %1210 = vmatprep.mubr.f32.mxu0 0.0
        %1211 = vmatmul.mubr.f32.gmra.mxu0 %v1117
        %v1212 = vpop.f32.mrf.mxu0
        %v1213 = vadd.f32 %v1096, %v1212
        %v1214 = vpop.f32.mrf.mxu0
        %v1215 = vadd.f32 %v1096, %v1214
        %1216 = vmatprep.mubr.f32.mxu0 0.0
        %1217 = vmatmul.mubr.f32.gmra.mxu0 %v1120
        %v1218 = vpop.f32.mrf.mxu0
        %v1219 = vadd.f32 %v1101, %v1218
        %v1220 = vpop.f32.mrf.mxu0
        %v1221 = vadd.f32 %v1101, %v1220
        %1222 = vdwg.mxu0
        %1223 = vmatprep.subr.mxu0 0.0
        %1224 = vmatpush1.msra.mxu0 0.0
        %1225 = vmatprep.subr.mxu0 0.0
        %1226 = vmatpush1.msra.mxu0 0.0
        %1227 = vmatprep.subr.mxu0 0.0
        %1228 = vmatpush1.msra.mxu0 0.0
        %1229 = vmatprep.subr.mxu0 0.0
        %1230 = vmatpush1.msra.mxu0 0.0
        %1231 = vmatprep.subr.mxu0 0.0
        %1232 = vmatpush1.msra.mxu0 0.0
        %1233 = vmatprep.subr.mxu0 0.0
        %1234 = vmatpush1.msra.mxu0 0.0
        %1235 = vmatprep.subr.mxu0 0.0
        %1236 = vmatpush1.msra.mxu0 0.0
        %1237 = vmatprep.subr.mxu0 0.0
        %1238 = vmatpush1.msra.mxu0 0.0
        %1239 = vmatprep.subr.mxu0 0.0
        %1240 = vmatpush1.msra.mxu0 0.0
        %1241 = vmatprep.subr.mxu0 0.0
        %1242 = vmatpush1.msra.mxu0 0.0
        %1243 = vmatprep.subr.mxu0 0.0
        %1244 = vmatpush1.msra.mxu0 0.0
        %1245 = vmatprep.subr.mxu0 0.0
        %1246 = vmatpush1.msra.mxu0 0.0
        %1247 = vmatprep.subr.mxu0 0.0
        %1248 = vmatpush1.msra.mxu0 0.0
        %1249 = vmatprep.subr.mxu0 %v1060
        %1250 = vmatpush1.msra.mxu0 %v1059
        %1251 = vmatprep.subr.mxu0 %v1056
        %1252 = vmatpush1.msra.mxu0 %v1055
        %1253 = vmatprep.subr.mxu0 %v1052
        %1254 = vmatpush1.msra.mxu0 %v1051
        %1255 = vmatprep.subr.mxu0 0.0
        %1256 = vmatpush2.msra.mxu0 0.0
        %1257 = vmatprep.subr.mxu0 0.0
        %1258 = vmatpush2.msra.mxu0 0.0
        %1259 = vmatprep.subr.mxu0 0.0
        %1260 = vmatpush2.msra.mxu0 0.0
        %1261 = vmatprep.subr.mxu0 0.0
        %1262 = vmatpush2.msra.mxu0 0.0
        %1263 = vmatprep.subr.mxu0 0.0
        %1264 = vmatpush2.msra.mxu0 0.0
        %1265 = vmatprep.subr.mxu0 0.0
        %1266 = vmatpush2.msra.mxu0 0.0
        %1267 = vmatprep.subr.mxu0 0.0
        %1268 = vmatpush2.msra.mxu0 0.0
        %1269 = vmatprep.subr.mxu0 0.0
        %1270 = vmatpush2.msra.mxu0 0.0
        %1271 = vmatprep.subr.mxu0 0.0
        %1272 = vmatpush2.msra.mxu0 0.0
        %1273 = vmatprep.subr.mxu0 0.0
        %1274 = vmatpush2.msra.mxu0 0.0
        %1275 = vmatprep.subr.mxu0 0.0
        %1276 = vmatpush2.msra.mxu0 0.0
        %1277 = vmatprep.subr.mxu0 0.0
        %1278 = vmatpush2.msra.mxu0 0.0
        %1279 = vmatprep.subr.mxu0 0.0
        %1280 = vmatpush2.msra.mxu0 0.0
        %1281 = vmatprep.subr.mxu0 0.0
        %1282 = vmatpush2.msra.mxu0 0.0
        %1283 = vmatprep.subr.mxu0 0.0
        %1284 = vmatpush2.msra.mxu0 0.0
        %1285 = vmatprep.subr.mxu0 0.0
        %1286 = vmatpush2.msra.mxu0 0.0
        %1287 = vmatprep.mubr.f32.mxu0 0.0
        %1288 = vmatmul.mubr.f32.gmra.mxu0 %v1105
        %v1289 = vpop.f32.mrf.mxu0
        %v1290 = vadd.f32 %v1076, %v1289
        %v1291 = vpop.f32.mrf.mxu0
        %v1292 = vadd.f32 %v1076, %v1291
        %1293 = vmatprep.mubr.f32.mxu0 0.0
        %1294 = vmatmul.mubr.f32.gmra.mxu0 %v1108
        %v1295 = vpop.f32.mrf.mxu0
        %v1296 = vadd.f32 %v1081, %v1295
        %v1297 = vpop.f32.mrf.mxu0
        %v1298 = vadd.f32 %v1081, %v1297
        %1299 = vmatprep.mubr.f32.mxu0 0.0
        %1300 = vmatmul.mubr.f32.gmra.mxu0 %v1111
        %v1301 = vpop.f32.mrf.mxu0
        %v1302 = vadd.f32 %v1086, %v1301
        %v1303 = vpop.f32.mrf.mxu0
        %v1304 = vadd.f32 %v1086, %v1303
        %1305 = vmatprep.mubr.f32.mxu0 0.0
        %1306 = vmatmul.mubr.f32.gmra.mxu0 %v1114
        %v1307 = vpop.f32.mrf.mxu0
        %v1308 = vadd.f32 %v1091, %v1307
        %v1309 = vpop.f32.mrf.mxu0
        %v1310 = vadd.f32 %v1091, %v1309
        %1311 = vmatprep.mubr.f32.mxu0 0.0
        %1312 = vmatmul.mubr.f32.gmra.mxu0 %v1117
        %v1313 = vpop.f32.mrf.mxu0
        %v1314 = vadd.f32 %v1096, %v1313
        %v1315 = vpop.f32.mrf.mxu0
        %v1316 = vadd.f32 %v1096, %v1315
        %1317 = vmatprep.mubr.f32.mxu0 0.0
        %1318 = vmatmul.mubr.f32.gmra.mxu0 %v1120
        %v1319 = vpop.f32.mrf.mxu0
        %v1320 = vadd.f32 %v1101, %v1319
        %v1321 = vpop.f32.mrf.mxu0
        %v1322 = vadd.f32 %v1101, %v1321
        %1323 = vdwg.mxu0
        %v1324 = vmin.f32 %v1189, 40.0
        %v1325 = vmin.f32 %v1191, 40.0
        %v1326 = vmin.f32 %v1290, 40.0
        %v1327 = vmin.f32 %v1292, 40.0
        %v1328 = vmin.f32 %v1195, 40.0
        %v1329 = vmin.f32 %v1197, 40.0
        %v1330 = vmin.f32 %v1296, 40.0
        %v1331 = vmin.f32 %v1298, 40.0
        %v1332 = vmin.f32 %v1201, 40.0
        %v1333 = vmin.f32 %v1203, 40.0
        %v1334 = vmin.f32 %v1302, 40.0
        %v1335 = vmin.f32 %v1304, 40.0
        %v1336 = vmin.f32 %v1207, 40.0
        %v1337 = vmin.f32 %v1209, 40.0
        %v1338 = vmin.f32 %v1308, 40.0
        %v1339 = vmin.f32 %v1310, 40.0
        %v1340 = vmin.f32 %v1213, 40.0
        %v1341 = vmin.f32 %v1215, 40.0
        %v1342 = vmin.f32 %v1314, 40.0
        %v1343 = vmin.f32 %v1316, 40.0
        %v1344 = vmin.f32 %v1219, 40.0
        %v1345 = vmin.f32 %v1221, 40.0
        %v1346 = vmin.f32 %v1320, 40.0
        %v1347 = vmin.f32 %v1322, 40.0
        %v1348 = vmul.f32 %v1324, 1.442695
        %v1349 = vpow.pop %v1348
        %v1350 = vmul.f32 %v1325, 1.442695
        %v1351 = vpow.pop %v1350
        %v1352 = vmul.f32 %v1326, 1.442695
        %v1353 = vpow.pop %v1352
        %v1354 = vmul.f32 %v1327, 1.442695
        %v1355 = vpow.pop %v1354
        %v1356 = vmul.f32 %v1328, 1.442695
        %v1357 = vpow.pop %v1356
        %v1358 = vmul.f32 %v1329, 1.442695
        %v1359 = vpow.pop %v1358
        %v1360 = vmul.f32 %v1330, 1.442695
        %v1361 = vpow.pop %v1360
        %v1362 = vmul.f32 %v1331, 1.442695
        %v1363 = vpow.pop %v1362
        %v1364 = vmul.f32 %v1332, 1.442695
        %v1365 = vpow.pop %v1364
        %v1366 = vmul.f32 %v1333, 1.442695
        %v1367 = vpow.pop %v1366
        %v1368 = vmul.f32 %v1334, 1.442695
        %v1369 = vpow.pop %v1368
        %v1370 = vmul.f32 %v1335, 1.442695
        %v1371 = vpow.pop %v1370
        %v1372 = vmul.f32 %v1336, 1.442695
        %v1373 = vpow.pop %v1372
        %v1374 = vmul.f32 %v1337, 1.442695
        %v1375 = vpow.pop %v1374
        %v1376 = vmul.f32 %v1338, 1.442695
        %v1377 = vpow.pop %v1376
        %v1378 = vmul.f32 %v1339, 1.442695
        %v1379 = vpow.pop %v1378
        %v1380 = vmul.f32 %v1340, 1.442695
        %v1381 = vpow.pop %v1380
        %v1382 = vmul.f32 %v1341, 1.442695
        %v1383 = vpow.pop %v1382
        %v1384 = vmul.f32 %v1342, 1.442695
        %v1385 = vpow.pop %v1384
        %v1386 = vmul.f32 %v1343, 1.442695
        %v1387 = vpow.pop %v1386
        %v1388 = vmul.f32 %v1344, 1.442695
        %v1389 = vpow.pop %v1388
        %v1390 = vmul.f32 %v1345, 1.442695
        %v1391 = vpow.pop %v1390
        %v1392 = vmul.f32 %v1346, 1.442695
        %v1393 = vpow.pop %v1392
        %v1394 = vmul.f32 %v1347, 1.442695
        %v1395 = vpow.pop %v1394
        %v1396 = vadd.f32 %v1349, 2.0
        %v1397 = vadd.f32 %v1351, 2.0
        %v1398 = vadd.f32 %v1353, 2.0
        %v1399 = vadd.f32 %v1355, 2.0
        %v1400 = vadd.f32 %v1357, 2.0
        %v1401 = vadd.f32 %v1359, 2.0
        %v1402 = vadd.f32 %v1361, 2.0
        %v1403 = vadd.f32 %v1363, 2.0
        %v1404 = vadd.f32 %v1365, 2.0
        %v1405 = vadd.f32 %v1367, 2.0
        %v1406 = vadd.f32 %v1369, 2.0
        %v1407 = vadd.f32 %v1371, 2.0
        %v1408 = vadd.f32 %v1373, 2.0
        %v1409 = vadd.f32 %v1375, 2.0
        %v1410 = vadd.f32 %v1377, 2.0
        %v1411 = vadd.f32 %v1379, 2.0
        %v1412 = vadd.f32 %v1381, 2.0
        %v1413 = vadd.f32 %v1383, 2.0
        %v1414 = vadd.f32 %v1385, 2.0
        %v1415 = vadd.f32 %v1387, 2.0
        %v1416 = vadd.f32 %v1389, 2.0
        %v1417 = vadd.f32 %v1391, 2.0
        %v1418 = vadd.f32 %v1393, 2.0
        %v1419 = vadd.f32 %v1395, 2.0
        %v1420 = vmul.f32 %v1349, %v1396
        %v1421 = vmul.f32 %v1351, %v1397
        %v1422 = vmul.f32 %v1353, %v1398
        %v1423 = vmul.f32 %v1355, %v1399
        %v1424 = vmul.f32 %v1357, %v1400
        %v1425 = vmul.f32 %v1359, %v1401
        %v1426 = vmul.f32 %v1361, %v1402
        %v1427 = vmul.f32 %v1363, %v1403
        %v1428 = vmul.f32 %v1365, %v1404
        %v1429 = vmul.f32 %v1367, %v1405
        %v1430 = vmul.f32 %v1369, %v1406
        %v1431 = vmul.f32 %v1371, %v1407
        %v1432 = vmul.f32 %v1373, %v1408
        %v1433 = vmul.f32 %v1375, %v1409
        %v1434 = vmul.f32 %v1377, %v1410
        %v1435 = vmul.f32 %v1379, %v1411
        %v1436 = vmul.f32 %v1381, %v1412
        %v1437 = vmul.f32 %v1383, %v1413
        %v1438 = vmul.f32 %v1385, %v1414
        %v1439 = vmul.f32 %v1387, %v1415
        %v1440 = vmul.f32 %v1389, %v1416
        %v1441 = vmul.f32 %v1391, %v1417
        %v1442 = vmul.f32 %v1393, %v1418
        %v1443 = vmul.f32 %v1395, %v1419
        %v1444 = vadd.f32 %v1420, 2.0
        %v1445 = vadd.f32 %v1421, 2.0
        %v1446 = vadd.f32 %v1422, 2.0
        %v1447 = vadd.f32 %v1423, 2.0
        %v1448 = vadd.f32 %v1424, 2.0
        %v1449 = vadd.f32 %v1425, 2.0
        %v1450 = vadd.f32 %v1426, 2.0
        %v1451 = vadd.f32 %v1427, 2.0
        %v1452 = vadd.f32 %v1428, 2.0
        %v1453 = vadd.f32 %v1429, 2.0
        %v1454 = vadd.f32 %v1430, 2.0
        %v1455 = vadd.f32 %v1431, 2.0
        %v1456 = vadd.f32 %v1432, 2.0
        %v1457 = vadd.f32 %v1433, 2.0
        %v1458 = vadd.f32 %v1434, 2.0
        %v1459 = vadd.f32 %v1435, 2.0
        %v1460 = vadd.f32 %v1436, 2.0
        %v1461 = vadd.f32 %v1437, 2.0
        %v1462 = vadd.f32 %v1438, 2.0
        %v1463 = vadd.f32 %v1439, 2.0
        %v1464 = vadd.f32 %v1440, 2.0
        %v1465 = vadd.f32 %v1441, 2.0
        %v1466 = vadd.f32 %v1442, 2.0
        %v1467 = vadd.f32 %v1443, 2.0
        %v1468 = vrcp.pop %v1444
        %v1469 = vrcp.pop %v1445
        %v1470 = vrcp.pop %v1446
        %v1471 = vrcp.pop %v1447
        %v1472 = vrcp.pop %v1448
        %v1473 = vrcp.pop %v1449
        %v1474 = vrcp.pop %v1450
        %v1475 = vrcp.pop %v1451
        %v1476 = vrcp.pop %v1452
        %v1477 = vrcp.pop %v1453
        %v1478 = vrcp.pop %v1454
        %v1479 = vrcp.pop %v1455
        %v1480 = vrcp.pop %v1456
        %v1481 = vrcp.pop %v1457
        %v1482 = vrcp.pop %v1458
        %v1483 = vrcp.pop %v1459
        %v1484 = vrcp.pop %v1460
        %v1485 = vrcp.pop %v1461
        %v1486 = vrcp.pop %v1462
        %v1487 = vrcp.pop %v1463
        %v1488 = vrcp.pop %v1464
        %v1489 = vrcp.pop %v1465
        %v1490 = vrcp.pop %v1466
        %v1491 = vrcp.pop %v1467
        %v1492 = vmul.f32 %v1444, %v1468
        %v1493 = vmul.f32 %v1445, %v1469
        %v1494 = vmul.f32 %v1446, %v1470
        %v1495 = vmul.f32 %v1447, %v1471
        %v1496 = vmul.f32 %v1448, %v1472
        %v1497 = vmul.f32 %v1449, %v1473
        %v1498 = vmul.f32 %v1450, %v1474
        %v1499 = vmul.f32 %v1451, %v1475
        %v1500 = vmul.f32 %v1452, %v1476
        %v1501 = vmul.f32 %v1453, %v1477
        %v1502 = vmul.f32 %v1454, %v1478
        %v1503 = vmul.f32 %v1455, %v1479
        %v1504 = vmul.f32 %v1456, %v1480
        %v1505 = vmul.f32 %v1457, %v1481
        %v1506 = vmul.f32 %v1458, %v1482
        %v1507 = vmul.f32 %v1459, %v1483
        %v1508 = vmul.f32 %v1460, %v1484
        %v1509 = vmul.f32 %v1461, %v1485
        %v1510 = vmul.f32 %v1462, %v1486
        %v1511 = vmul.f32 %v1463, %v1487
        %v1512 = vmul.f32 %v1464, %v1488
        %v1513 = vmul.f32 %v1465, %v1489
        %v1514 = vmul.f32 %v1466, %v1490
        %v1515 = vmul.f32 %v1467, %v1491
        %v1516 = vsub.f32 2.0, %v1492
        %v1517 = vsub.f32 2.0, %v1493
        %v1518 = vsub.f32 2.0, %v1494
        %v1519 = vsub.f32 2.0, %v1495
        %v1520 = vsub.f32 2.0, %v1496
        %v1521 = vsub.f32 2.0, %v1497
        %v1522 = vsub.f32 2.0, %v1498
        %v1523 = vsub.f32 2.0, %v1499
        %v1524 = vsub.f32 2.0, %v1500
        %v1525 = vsub.f32 2.0, %v1501
        %v1526 = vsub.f32 2.0, %v1502
        %v1527 = vsub.f32 2.0, %v1503
        %v1528 = vsub.f32 2.0, %v1504
        %v1529 = vsub.f32 2.0, %v1505
        %v1530 = vsub.f32 2.0, %v1506
        %v1531 = vsub.f32 2.0, %v1507
        %v1532 = vsub.f32 2.0, %v1508
        %v1533 = vsub.f32 2.0, %v1509
        %v1534 = vsub.f32 2.0, %v1510
        %v1535 = vsub.f32 2.0, %v1511
        %v1536 = vsub.f32 2.0, %v1512
        %v1537 = vsub.f32 2.0, %v1513
        %v1538 = vsub.f32 2.0, %v1514
        %v1539 = vsub.f32 2.0, %v1515
        %v1540 = vmul.f32 %v1468, %v1516
        %v1541 = vmul.f32 %v1469, %v1517
        %v1542 = vmul.f32 %v1470, %v1518
        %v1543 = vmul.f32 %v1471, %v1519
        %v1544 = vmul.f32 %v1472, %v1520
        %v1545 = vmul.f32 %v1473, %v1521
        %v1546 = vmul.f32 %v1474, %v1522
        %v1547 = vmul.f32 %v1475, %v1523
        %v1548 = vmul.f32 %v1476, %v1524
        %v1549 = vmul.f32 %v1477, %v1525
        %v1550 = vmul.f32 %v1478, %v1526
        %v1551 = vmul.f32 %v1479, %v1527
        %v1552 = vmul.f32 %v1480, %v1528
        %v1553 = vmul.f32 %v1481, %v1529
        %v1554 = vmul.f32 %v1482, %v1530
        %v1555 = vmul.f32 %v1483, %v1531
        %v1556 = vmul.f32 %v1484, %v1532
        %v1557 = vmul.f32 %v1485, %v1533
        %v1558 = vmul.f32 %v1486, %v1534
        %v1559 = vmul.f32 %v1487, %v1535
        %v1560 = vmul.f32 %v1488, %v1536
        %v1561 = vmul.f32 %v1489, %v1537
        %v1562 = vmul.f32 %v1490, %v1538
        %v1563 = vmul.f32 %v1491, %v1539
        %v1564 = vmul.f32 %v1189, %v1420
        %v1565 = vmul.f32 %v1191, %v1421
        %v1566 = vmul.f32 %v1290, %v1422
        %v1567 = vmul.f32 %v1292, %v1423
        %v1568 = vmul.f32 %v1195, %v1424
        %v1569 = vmul.f32 %v1197, %v1425
        %v1570 = vmul.f32 %v1296, %v1426
        %v1571 = vmul.f32 %v1298, %v1427
        %v1572 = vmul.f32 %v1201, %v1428
        %v1573 = vmul.f32 %v1203, %v1429
        %v1574 = vmul.f32 %v1302, %v1430
        %v1575 = vmul.f32 %v1304, %v1431
        %v1576 = vmul.f32 %v1207, %v1432
        %v1577 = vmul.f32 %v1209, %v1433
        %v1578 = vmul.f32 %v1308, %v1434
        %v1579 = vmul.f32 %v1310, %v1435
        %v1580 = vmul.f32 %v1213, %v1436
        %v1581 = vmul.f32 %v1215, %v1437
        %v1582 = vmul.f32 %v1314, %v1438
        %v1583 = vmul.f32 %v1316, %v1439
        %v1584 = vmul.f32 %v1219, %v1440
        %v1585 = vmul.f32 %v1221, %v1441
        %v1586 = vmul.f32 %v1320, %v1442
        %v1587 = vmul.f32 %v1322, %v1443
        %v1588 = vmul.f32 %v1564, %v1540
        %v1589 = vmul.f32 %v1565, %v1541
        %v1590 = vmul.f32 %v1566, %v1542
        %v1591 = vmul.f32 %v1567, %v1543
        %v1592 = vmul.f32 %v1568, %v1544
        %v1593 = vmul.f32 %v1569, %v1545
        %v1594 = vmul.f32 %v1570, %v1546
        %v1595 = vmul.f32 %v1571, %v1547
        %v1596 = vmul.f32 %v1572, %v1548
        %v1597 = vmul.f32 %v1573, %v1549
        %v1598 = vmul.f32 %v1574, %v1550
        %v1599 = vmul.f32 %v1575, %v1551
        %v1600 = vmul.f32 %v1576, %v1552
        %v1601 = vmul.f32 %v1577, %v1553
        %v1602 = vmul.f32 %v1578, %v1554
        %v1603 = vmul.f32 %v1579, %v1555
        %v1604 = vmul.f32 %v1580, %v1556
        %v1605 = vmul.f32 %v1581, %v1557
        %v1606 = vmul.f32 %v1582, %v1558
        %v1607 = vmul.f32 %v1583, %v1559
        %v1608 = vmul.f32 %v1584, %v1560
        %v1609 = vmul.f32 %v1585, %v1561
        %v1610 = vmul.f32 %v1586, %v1562
        %v1611 = vmul.f32 %v1587, %v1563
        %v1612 = vld [vmem:[%s5] sm:$0xff]
        %v1613 = vld [vmem:[%s5 + $0x8] sm:$0xff]
        %v1614 = vld [vmem:[%s5 + $0x10] sm:$0xff]
        %v1615 = vld [vmem:[%s5 + $0x18] sm:$0xff]
        %v1616 = vld [vmem:[%s5 + $0x20] sm:$0xff]
        %v1617 = vld [vmem:[%s5 + $0x28] sm:$0xff]
        %v1618 = vld [vmem:[%s6] sm:$0xff]
        %v1619 = vld [vmem:[%s6 + $0x8] sm:$0xff]
        %v1620 = vld [vmem:[%s6 + $0x10] sm:$0xff]
        %v1621 = vld [vmem:[%s6 + $0x18] sm:$0xff]
        %v1622 = vld [vmem:[%s6 + $0x20] sm:$0xff]
        %v1623 = vld [vmem:[%s6 + $0x28] sm:$0xff]
        %1625 = vset.pattern.permute.xlu0 0
        %1626 = vperm.xlu0 %1625, %v1618
        %v1627 = vpop.permute.xlu0 %1626
        %1630 = vset.pattern.permute.xlu0 0
        %1631 = vperm.xlu0 %1630, %v1619
        %v1632 = vpop.permute.xlu0 %1631
        %1635 = vset.pattern.permute.xlu0 0
        %1636 = vperm.xlu0 %1635, %v1620
        %v1637 = vpop.permute.xlu0 %1636
        %1640 = vset.pattern.permute.xlu0 0
        %1641 = vperm.xlu0 %1640, %v1621
        %v1642 = vpop.permute.xlu0 %1641
        %1645 = vset.pattern.permute.xlu0 0
        %1646 = vperm.xlu0 %1645, %v1622
        %v1647 = vpop.permute.xlu0 %1646
        %1650 = vset.pattern.permute.xlu0 0
        %1651 = vperm.xlu0 %1650, %v1623
        %v1652 = vpop.permute.xlu0 %1651
        %vm1654 = vcmask 392192
        %v1656 = vsel %vm1654, %v1612, 0
        %v1659 = vsel %vm1654, %v1613, 0
        %v1662 = vsel %vm1654, %v1614, 0
        %v1665 = vsel %vm1654, %v1615, 0
        %v1668 = vsel %vm1654, %v1616, 0
        %v1671 = vsel %vm1654, %v1617, 0
        %1673 = vmatprep.subr.mxu0 0.0
        %1674 = vmatpush1.msra.mxu0 0.0
        %1675 = vmatprep.subr.mxu0 0.0
        %1676 = vmatpush1.msra.mxu0 0.0
        %1677 = vmatprep.subr.mxu0 0.0
        %1678 = vmatpush1.msra.mxu0 0.0
        %1679 = vmatprep.subr.mxu0 0.0
        %1680 = vmatpush1.msra.mxu0 0.0
        %1681 = vmatprep.subr.mxu0 0.0
        %1682 = vmatpush1.msra.mxu0 0.0
        %1683 = vmatprep.subr.mxu0 0.0
        %1684 = vmatpush1.msra.mxu0 0.0
        %1685 = vmatprep.subr.mxu0 0.0
        %1686 = vmatpush1.msra.mxu0 0.0
        %1687 = vmatprep.subr.mxu0 0.0
        %1688 = vmatpush1.msra.mxu0 0.0
        %1689 = vmatprep.subr.mxu0 0.0
        %1690 = vmatpush1.msra.mxu0 0.0
        %1691 = vmatprep.subr.mxu0 0.0
        %1692 = vmatpush1.msra.mxu0 0.0
        %1693 = vmatprep.subr.mxu0 %v1609
        %1694 = vmatpush1.msra.mxu0 %v1608
        %1695 = vmatprep.subr.mxu0 %v1605
        %1696 = vmatpush1.msra.mxu0 %v1604
        %1697 = vmatprep.subr.mxu0 %v1601
        %1698 = vmatpush1.msra.mxu0 %v1600
        %1699 = vmatprep.subr.mxu0 %v1597
        %1700 = vmatpush1.msra.mxu0 %v1596
        %1701 = vmatprep.subr.mxu0 %v1593
        %1702 = vmatpush1.msra.mxu0 %v1592
        %1703 = vmatprep.subr.mxu0 %v1589
        %1704 = vmatpush1.msra.mxu0 %v1588
        %1705 = vmatprep.subr.mxu0 0.0
        %1706 = vmatpush2.msra.mxu0 0.0
        %1707 = vmatprep.subr.mxu0 0.0
        %1708 = vmatpush2.msra.mxu0 0.0
        %1709 = vmatprep.subr.mxu0 0.0
        %1710 = vmatpush2.msra.mxu0 0.0
        %1711 = vmatprep.subr.mxu0 0.0
        %1712 = vmatpush2.msra.mxu0 0.0
        %1713 = vmatprep.subr.mxu0 0.0
        %1714 = vmatpush2.msra.mxu0 0.0
        %1715 = vmatprep.subr.mxu0 0.0
        %1716 = vmatpush2.msra.mxu0 0.0
        %1717 = vmatprep.subr.mxu0 0.0
        %1718 = vmatpush2.msra.mxu0 0.0
        %1719 = vmatprep.subr.mxu0 0.0
        %1720 = vmatpush2.msra.mxu0 0.0
        %1721 = vmatprep.subr.mxu0 0.0
        %1722 = vmatpush2.msra.mxu0 0.0
        %1723 = vmatprep.subr.mxu0 0.0
        %1724 = vmatpush2.msra.mxu0 0.0
        %1725 = vmatprep.subr.mxu0 0.0
        %1726 = vmatpush2.msra.mxu0 0.0
        %1727 = vmatprep.subr.mxu0 0.0
        %1728 = vmatpush2.msra.mxu0 0.0
        %1729 = vmatprep.subr.mxu0 0.0
        %1730 = vmatpush2.msra.mxu0 0.0
        %1731 = vmatprep.subr.mxu0 0.0
        %1732 = vmatpush2.msra.mxu0 0.0
        %1733 = vmatprep.subr.mxu0 0.0
        %1734 = vmatpush2.msra.mxu0 0.0
        %1735 = vmatprep.subr.mxu0 0.0
        %1736 = vmatpush2.msra.mxu0 0.0
        %1737 = vmatprep.mubr.f32.mxu0 0.0
        %1738 = vmatmul.mubr.f32.gmra.mxu0 %v1656
        %v1739 = vpop.f32.mrf.mxu0
        %v1740 = vadd.f32 %v1627, %v1739
        %v1741 = vpop.f32.mrf.mxu0
        %v1742 = vadd.f32 %v1627, %v1741
        %1743 = vmatprep.mubr.f32.mxu0 0.0
        %1744 = vmatmul.mubr.f32.gmra.mxu0 %v1659
        %v1745 = vpop.f32.mrf.mxu0
        %v1746 = vadd.f32 %v1632, %v1745
        %v1747 = vpop.f32.mrf.mxu0
        %v1748 = vadd.f32 %v1632, %v1747
        %1749 = vmatprep.mubr.f32.mxu0 0.0
        %1750 = vmatmul.mubr.f32.gmra.mxu0 %v1662
        %v1751 = vpop.f32.mrf.mxu0
        %v1752 = vadd.f32 %v1637, %v1751
        %v1753 = vpop.f32.mrf.mxu0
        %v1754 = vadd.f32 %v1637, %v1753
        %1755 = vmatprep.mubr.f32.mxu0 0.0
        %1756 = vmatmul.mubr.f32.gmra.mxu0 %v1665
        %v1757 = vpop.f32.mrf.mxu0
        %v1758 = vadd.f32 %v1642, %v1757
        %v1759 = vpop.f32.mrf.mxu0
        %v1760 = vadd.f32 %v1642, %v1759
        %1761 = vmatprep.mubr.f32.mxu0 0.0
        %1762 = vmatmul.mubr.f32.gmra.mxu0 %v1668
        %v1763 = vpop.f32.mrf.mxu0
        %v1764 = vadd.f32 %v1647, %v1763
        %v1765 = vpop.f32.mrf.mxu0
        %v1766 = vadd.f32 %v1647, %v1765
        %1767 = vmatprep.mubr.f32.mxu0 0.0
        %1768 = vmatmul.mubr.f32.gmra.mxu0 %v1671
        %v1769 = vpop.f32.mrf.mxu0
        %v1770 = vadd.f32 %v1652, %v1769
        %v1771 = vpop.f32.mrf.mxu0
        %v1772 = vadd.f32 %v1652, %v1771
        %1773 = vdwg.mxu0
        %1774 = vmatprep.subr.mxu0 0.0
        %1775 = vmatpush1.msra.mxu0 0.0
        %1776 = vmatprep.subr.mxu0 0.0
        %1777 = vmatpush1.msra.mxu0 0.0
        %1778 = vmatprep.subr.mxu0 0.0
        %1779 = vmatpush1.msra.mxu0 0.0
        %1780 = vmatprep.subr.mxu0 0.0
        %1781 = vmatpush1.msra.mxu0 0.0
        %1782 = vmatprep.subr.mxu0 0.0
        %1783 = vmatpush1.msra.mxu0 0.0
        %1784 = vmatprep.subr.mxu0 0.0
        %1785 = vmatpush1.msra.mxu0 0.0
        %1786 = vmatprep.subr.mxu0 0.0
        %1787 = vmatpush1.msra.mxu0 0.0
        %1788 = vmatprep.subr.mxu0 0.0
        %1789 = vmatpush1.msra.mxu0 0.0
        %1790 = vmatprep.subr.mxu0 0.0
        %1791 = vmatpush1.msra.mxu0 0.0
        %1792 = vmatprep.subr.mxu0 0.0
        %1793 = vmatpush1.msra.mxu0 0.0
        %1794 = vmatprep.subr.mxu0 %v1611
        %1795 = vmatpush1.msra.mxu0 %v1610
        %1796 = vmatprep.subr.mxu0 %v1607
        %1797 = vmatpush1.msra.mxu0 %v1606
        %1798 = vmatprep.subr.mxu0 %v1603
        %1799 = vmatpush1.msra.mxu0 %v1602
        %1800 = vmatprep.subr.mxu0 %v1599
        %1801 = vmatpush1.msra.mxu0 %v1598
        %1802 = vmatprep.subr.mxu0 %v1595
        %1803 = vmatpush1.msra.mxu0 %v1594
        %1804 = vmatprep.subr.mxu0 %v1591
        %1805 = vmatpush1.msra.mxu0 %v1590
        %1806 = vmatprep.subr.mxu0 0.0
        %1807 = vmatpush2.msra.mxu0 0.0
        %1808 = vmatprep.subr.mxu0 0.0
        %1809 = vmatpush2.msra.mxu0 0.0
        %1810 = vmatprep.subr.mxu0 0.0
        %1811 = vmatpush2.msra.mxu0 0.0
        %1812 = vmatprep.subr.mxu0 0.0
        %1813 = vmatpush2.msra.mxu0 0.0
        %1814 = vmatprep.subr.mxu0 0.0
        %1815 = vmatpush2.msra.mxu0 0.0
        %1816 = vmatprep.subr.mxu0 0.0
        %1817 = vmatpush2.msra.mxu0 0.0
        %1818 = vmatprep.subr.mxu0 0.0
        %1819 = vmatpush2.msra.mxu0 0.0
        %1820 = vmatprep.subr.mxu0 0.0
        %1821 = vmatpush2.msra.mxu0 0.0
        %1822 = vmatprep.subr.mxu0 0.0
        %1823 = vmatpush2.msra.mxu0 0.0
        %1824 = vmatprep.subr.mxu0 0.0
        %1825 = vmatpush2.msra.mxu0 0.0
        %1826 = vmatprep.subr.mxu0 0.0
        %1827 = vmatpush2.msra.mxu0 0.0
        %1828 = vmatprep.subr.mxu0 0.0
        %1829 = vmatpush2.msra.mxu0 0.0
        %1830 = vmatprep.subr.mxu0 0.0
        %1831 = vmatpush2.msra.mxu0 0.0
        %1832 = vmatprep.subr.mxu0 0.0
        %1833 = vmatpush2.msra.mxu0 0.0
        %1834 = vmatprep.subr.mxu0 0.0
        %1835 = vmatpush2.msra.mxu0 0.0
        %1836 = vmatprep.subr.mxu0 0.0
        %1837 = vmatpush2.msra.mxu0 0.0
        %1838 = vmatprep.mubr.f32.mxu0 0.0
        %1839 = vmatmul.mubr.f32.gmra.mxu0 %v1656
        %v1840 = vpop.f32.mrf.mxu0
        %v1841 = vadd.f32 %v1627, %v1840
        %v1842 = vpop.f32.mrf.mxu0
        %v1843 = vadd.f32 %v1627, %v1842
        %1844 = vmatprep.mubr.f32.mxu0 0.0
        %1845 = vmatmul.mubr.f32.gmra.mxu0 %v1659
        %v1846 = vpop.f32.mrf.mxu0
        %v1847 = vadd.f32 %v1632, %v1846
        %v1848 = vpop.f32.mrf.mxu0
        %v1849 = vadd.f32 %v1632, %v1848
        %1850 = vmatprep.mubr.f32.mxu0 0.0
        %1851 = vmatmul.mubr.f32.gmra.mxu0 %v1662
        %v1852 = vpop.f32.mrf.mxu0
        %v1853 = vadd.f32 %v1637, %v1852
        %v1854 = vpop.f32.mrf.mxu0
        %v1855 = vadd.f32 %v1637, %v1854
        %1856 = vmatprep.mubr.f32.mxu0 0.0
        %1857 = vmatmul.mubr.f32.gmra.mxu0 %v1665
        %v1858 = vpop.f32.mrf.mxu0
        %v1859 = vadd.f32 %v1642, %v1858
        %v1860 = vpop.f32.mrf.mxu0
        %v1861 = vadd.f32 %v1642, %v1860
        %1862 = vmatprep.mubr.f32.mxu0 0.0
        %1863 = vmatmul.mubr.f32.gmra.mxu0 %v1668
        %v1864 = vpop.f32.mrf.mxu0
        %v1865 = vadd.f32 %v1647, %v1864
        %v1866 = vpop.f32.mrf.mxu0
        %v1867 = vadd.f32 %v1647, %v1866
        %1868 = vmatprep.mubr.f32.mxu0 0.0
        %1869 = vmatmul.mubr.f32.gmra.mxu0 %v1671
        %v1870 = vpop.f32.mrf.mxu0
        %v1871 = vadd.f32 %v1652, %v1870
        %v1872 = vpop.f32.mrf.mxu0
        %v1873 = vadd.f32 %v1652, %v1872
        %1874 = vdwg.mxu0
        %v1875 = vmin.f32 %v1740, 40.0
        %v1876 = vmin.f32 %v1742, 40.0
        %v1877 = vmin.f32 %v1841, 40.0
        %v1878 = vmin.f32 %v1843, 40.0
        %v1879 = vmin.f32 %v1746, 40.0
        %v1880 = vmin.f32 %v1748, 40.0
        %v1881 = vmin.f32 %v1847, 40.0
        %v1882 = vmin.f32 %v1849, 40.0
        %v1883 = vmin.f32 %v1752, 40.0
        %v1884 = vmin.f32 %v1754, 40.0
        %v1885 = vmin.f32 %v1853, 40.0
        %v1886 = vmin.f32 %v1855, 40.0
        %v1887 = vmin.f32 %v1758, 40.0
        %v1888 = vmin.f32 %v1760, 40.0
        %v1889 = vmin.f32 %v1859, 40.0
        %v1890 = vmin.f32 %v1861, 40.0
        %v1891 = vmin.f32 %v1764, 40.0
        %v1892 = vmin.f32 %v1766, 40.0
        %v1893 = vmin.f32 %v1865, 40.0
        %v1894 = vmin.f32 %v1867, 40.0
        %v1895 = vmin.f32 %v1770, 40.0
        %v1896 = vmin.f32 %v1772, 40.0
        %v1897 = vmin.f32 %v1871, 40.0
        %v1898 = vmin.f32 %v1873, 40.0
        %v1899 = vmul.f32 %v1875, 1.442695
        %v1900 = vpow.pop %v1899
        %v1901 = vmul.f32 %v1876, 1.442695
        %v1902 = vpow.pop %v1901
        %v1903 = vmul.f32 %v1877, 1.442695
        %v1904 = vpow.pop %v1903
        %v1905 = vmul.f32 %v1878, 1.442695
        %v1906 = vpow.pop %v1905
        %v1907 = vmul.f32 %v1879, 1.442695
        %v1908 = vpow.pop %v1907
        %v1909 = vmul.f32 %v1880, 1.442695
        %v1910 = vpow.pop %v1909
        %v1911 = vmul.f32 %v1881, 1.442695
        %v1912 = vpow.pop %v1911
        %v1913 = vmul.f32 %v1882, 1.442695
        %v1914 = vpow.pop %v1913
        %v1915 = vmul.f32 %v1883, 1.442695
        %v1916 = vpow.pop %v1915
        %v1917 = vmul.f32 %v1884, 1.442695
        %v1918 = vpow.pop %v1917
        %v1919 = vmul.f32 %v1885, 1.442695
        %v1920 = vpow.pop %v1919
        %v1921 = vmul.f32 %v1886, 1.442695
        %v1922 = vpow.pop %v1921
        %v1923 = vmul.f32 %v1887, 1.442695
        %v1924 = vpow.pop %v1923
        %v1925 = vmul.f32 %v1888, 1.442695
        %v1926 = vpow.pop %v1925
        %v1927 = vmul.f32 %v1889, 1.442695
        %v1928 = vpow.pop %v1927
        %v1929 = vmul.f32 %v1890, 1.442695
        %v1930 = vpow.pop %v1929
        %v1931 = vmul.f32 %v1891, 1.442695
        %v1932 = vpow.pop %v1931
        %v1933 = vmul.f32 %v1892, 1.442695
        %v1934 = vpow.pop %v1933
        %v1935 = vmul.f32 %v1893, 1.442695
        %v1936 = vpow.pop %v1935
        %v1937 = vmul.f32 %v1894, 1.442695
        %v1938 = vpow.pop %v1937
        %v1939 = vmul.f32 %v1895, 1.442695
        %v1940 = vpow.pop %v1939
        %v1941 = vmul.f32 %v1896, 1.442695
        %v1942 = vpow.pop %v1941
        %v1943 = vmul.f32 %v1897, 1.442695
        %v1944 = vpow.pop %v1943
        %v1945 = vmul.f32 %v1898, 1.442695
        %v1946 = vpow.pop %v1945
        %v1947 = vadd.f32 %v1900, 2.0
        %v1948 = vadd.f32 %v1902, 2.0
        %v1949 = vadd.f32 %v1904, 2.0
        %v1950 = vadd.f32 %v1906, 2.0
        %v1951 = vadd.f32 %v1908, 2.0
        %v1952 = vadd.f32 %v1910, 2.0
        %v1953 = vadd.f32 %v1912, 2.0
        %v1954 = vadd.f32 %v1914, 2.0
        %v1955 = vadd.f32 %v1916, 2.0
        %v1956 = vadd.f32 %v1918, 2.0
        %v1957 = vadd.f32 %v1920, 2.0
        %v1958 = vadd.f32 %v1922, 2.0
        %v1959 = vadd.f32 %v1924, 2.0
        %v1960 = vadd.f32 %v1926, 2.0
        %v1961 = vadd.f32 %v1928, 2.0
        %v1962 = vadd.f32 %v1930, 2.0
        %v1963 = vadd.f32 %v1932, 2.0
        %v1964 = vadd.f32 %v1934, 2.0
        %v1965 = vadd.f32 %v1936, 2.0
        %v1966 = vadd.f32 %v1938, 2.0
        %v1967 = vadd.f32 %v1940, 2.0
        %v1968 = vadd.f32 %v1942, 2.0
        %v1969 = vadd.f32 %v1944, 2.0
        %v1970 = vadd.f32 %v1946, 2.0
        %v1971 = vmul.f32 %v1900, %v1947
        %v1972 = vmul.f32 %v1902, %v1948
        %v1973 = vmul.f32 %v1904, %v1949
        %v1974 = vmul.f32 %v1906, %v1950
        %v1975 = vmul.f32 %v1908, %v1951
        %v1976 = vmul.f32 %v1910, %v1952
        %v1977 = vmul.f32 %v1912, %v1953
        %v1978 = vmul.f32 %v1914, %v1954
        %v1979 = vmul.f32 %v1916, %v1955
        %v1980 = vmul.f32 %v1918, %v1956
        %v1981 = vmul.f32 %v1920, %v1957
        %v1982 = vmul.f32 %v1922, %v1958
        %v1983 = vmul.f32 %v1924, %v1959
        %v1984 = vmul.f32 %v1926, %v1960
        %v1985 = vmul.f32 %v1928, %v1961
        %v1986 = vmul.f32 %v1930, %v1962
        %v1987 = vmul.f32 %v1932, %v1963
        %v1988 = vmul.f32 %v1934, %v1964
        %v1989 = vmul.f32 %v1936, %v1965
        %v1990 = vmul.f32 %v1938, %v1966
        %v1991 = vmul.f32 %v1940, %v1967
        %v1992 = vmul.f32 %v1942, %v1968
        %v1993 = vmul.f32 %v1944, %v1969
        %v1994 = vmul.f32 %v1946, %v1970
        %v1995 = vadd.f32 %v1971, 2.0
        %v1996 = vadd.f32 %v1972, 2.0
        %v1997 = vadd.f32 %v1973, 2.0
        %v1998 = vadd.f32 %v1974, 2.0
        %v1999 = vadd.f32 %v1975, 2.0
        %v2000 = vadd.f32 %v1976, 2.0
        %v2001 = vadd.f32 %v1977, 2.0
        %v2002 = vadd.f32 %v1978, 2.0
        %v2003 = vadd.f32 %v1979, 2.0
        %v2004 = vadd.f32 %v1980, 2.0
        %v2005 = vadd.f32 %v1981, 2.0
        %v2006 = vadd.f32 %v1982, 2.0
        %v2007 = vadd.f32 %v1983, 2.0
        %v2008 = vadd.f32 %v1984, 2.0
        %v2009 = vadd.f32 %v1985, 2.0
        %v2010 = vadd.f32 %v1986, 2.0
        %v2011 = vadd.f32 %v1987, 2.0
        %v2012 = vadd.f32 %v1988, 2.0
        %v2013 = vadd.f32 %v1989, 2.0
        %v2014 = vadd.f32 %v1990, 2.0
        %v2015 = vadd.f32 %v1991, 2.0
        %v2016 = vadd.f32 %v1992, 2.0
        %v2017 = vadd.f32 %v1993, 2.0
        %v2018 = vadd.f32 %v1994, 2.0
        %v2019 = vrcp.pop %v1995
        %v2020 = vrcp.pop %v1996
        %v2021 = vrcp.pop %v1997
        %v2022 = vrcp.pop %v1998
        %v2023 = vrcp.pop %v1999
        %v2024 = vrcp.pop %v2000
        %v2025 = vrcp.pop %v2001
        %v2026 = vrcp.pop %v2002
        %v2027 = vrcp.pop %v2003
        %v2028 = vrcp.pop %v2004
        %v2029 = vrcp.pop %v2005
        %v2030 = vrcp.pop %v2006
        %v2031 = vrcp.pop %v2007
        %v2032 = vrcp.pop %v2008
        %v2033 = vrcp.pop %v2009
        %v2034 = vrcp.pop %v2010
        %v2035 = vrcp.pop %v2011
        %v2036 = vrcp.pop %v2012
        %v2037 = vrcp.pop %v2013
        %v2038 = vrcp.pop %v2014
        %v2039 = vrcp.pop %v2015
        %v2040 = vrcp.pop %v2016
        %v2041 = vrcp.pop %v2017
        %v2042 = vrcp.pop %v2018
        %v2043 = vmul.f32 %v1995, %v2019
        %v2044 = vmul.f32 %v1996, %v2020
        %v2045 = vmul.f32 %v1997, %v2021
        %v2046 = vmul.f32 %v1998, %v2022
        %v2047 = vmul.f32 %v1999, %v2023
        %v2048 = vmul.f32 %v2000, %v2024
        %v2049 = vmul.f32 %v2001, %v2025
        %v2050 = vmul.f32 %v2002, %v2026
        %v2051 = vmul.f32 %v2003, %v2027
        %v2052 = vmul.f32 %v2004, %v2028
        %v2053 = vmul.f32 %v2005, %v2029
        %v2054 = vmul.f32 %v2006, %v2030
        %v2055 = vmul.f32 %v2007, %v2031
        %v2056 = vmul.f32 %v2008, %v2032
        %v2057 = vmul.f32 %v2009, %v2033
        %v2058 = vmul.f32 %v2010, %v2034
        %v2059 = vmul.f32 %v2011, %v2035
        %v2060 = vmul.f32 %v2012, %v2036
        %v2061 = vmul.f32 %v2013, %v2037
        %v2062 = vmul.f32 %v2014, %v2038
        %v2063 = vmul.f32 %v2015, %v2039
        %v2064 = vmul.f32 %v2016, %v2040
        %v2065 = vmul.f32 %v2017, %v2041
        %v2066 = vmul.f32 %v2018, %v2042
        %v2067 = vsub.f32 2.0, %v2043
        %v2068 = vsub.f32 2.0, %v2044
        %v2069 = vsub.f32 2.0, %v2045
        %v2070 = vsub.f32 2.0, %v2046
        %v2071 = vsub.f32 2.0, %v2047
        %v2072 = vsub.f32 2.0, %v2048
        %v2073 = vsub.f32 2.0, %v2049
        %v2074 = vsub.f32 2.0, %v2050
        %v2075 = vsub.f32 2.0, %v2051
        %v2076 = vsub.f32 2.0, %v2052
        %v2077 = vsub.f32 2.0, %v2053
        %v2078 = vsub.f32 2.0, %v2054
        %v2079 = vsub.f32 2.0, %v2055
        %v2080 = vsub.f32 2.0, %v2056
        %v2081 = vsub.f32 2.0, %v2057
        %v2082 = vsub.f32 2.0, %v2058
        %v2083 = vsub.f32 2.0, %v2059
        %v2084 = vsub.f32 2.0, %v2060
        %v2085 = vsub.f32 2.0, %v2061
        %v2086 = vsub.f32 2.0, %v2062
        %v2087 = vsub.f32 2.0, %v2063
        %v2088 = vsub.f32 2.0, %v2064
        %v2089 = vsub.f32 2.0, %v2065
        %v2090 = vsub.f32 2.0, %v2066
        %v2091 = vmul.f32 %v2019, %v2067
        %v2092 = vmul.f32 %v2020, %v2068
        %v2093 = vmul.f32 %v2021, %v2069
        %v2094 = vmul.f32 %v2022, %v2070
        %v2095 = vmul.f32 %v2023, %v2071
        %v2096 = vmul.f32 %v2024, %v2072
        %v2097 = vmul.f32 %v2025, %v2073
        %v2098 = vmul.f32 %v2026, %v2074
        %v2099 = vmul.f32 %v2027, %v2075
        %v2100 = vmul.f32 %v2028, %v2076
        %v2101 = vmul.f32 %v2029, %v2077
        %v2102 = vmul.f32 %v2030, %v2078
        %v2103 = vmul.f32 %v2031, %v2079
        %v2104 = vmul.f32 %v2032, %v2080
        %v2105 = vmul.f32 %v2033, %v2081
        %v2106 = vmul.f32 %v2034, %v2082
        %v2107 = vmul.f32 %v2035, %v2083
        %v2108 = vmul.f32 %v2036, %v2084
        %v2109 = vmul.f32 %v2037, %v2085
        %v2110 = vmul.f32 %v2038, %v2086
        %v2111 = vmul.f32 %v2039, %v2087
        %v2112 = vmul.f32 %v2040, %v2088
        %v2113 = vmul.f32 %v2041, %v2089
        %v2114 = vmul.f32 %v2042, %v2090
        %v2115 = vmul.f32 %v1740, %v1971
        %v2116 = vmul.f32 %v1742, %v1972
        %v2117 = vmul.f32 %v1841, %v1973
        %v2118 = vmul.f32 %v1843, %v1974
        %v2119 = vmul.f32 %v1746, %v1975
        %v2120 = vmul.f32 %v1748, %v1976
        %v2121 = vmul.f32 %v1847, %v1977
        %v2122 = vmul.f32 %v1849, %v1978
        %v2123 = vmul.f32 %v1752, %v1979
        %v2124 = vmul.f32 %v1754, %v1980
        %v2125 = vmul.f32 %v1853, %v1981
        %v2126 = vmul.f32 %v1855, %v1982
        %v2127 = vmul.f32 %v1758, %v1983
        %v2128 = vmul.f32 %v1760, %v1984
        %v2129 = vmul.f32 %v1859, %v1985
        %v2130 = vmul.f32 %v1861, %v1986
        %v2131 = vmul.f32 %v1764, %v1987
        %v2132 = vmul.f32 %v1766, %v1988
        %v2133 = vmul.f32 %v1865, %v1989
        %v2134 = vmul.f32 %v1867, %v1990
        %v2135 = vmul.f32 %v1770, %v1991
        %v2136 = vmul.f32 %v1772, %v1992
        %v2137 = vmul.f32 %v1871, %v1993
        %v2138 = vmul.f32 %v1873, %v1994
        %v2139 = vmul.f32 %v2115, %v2091
        %v2140 = vmul.f32 %v2116, %v2092
        %v2141 = vmul.f32 %v2117, %v2093
        %v2142 = vmul.f32 %v2118, %v2094
        %v2143 = vmul.f32 %v2119, %v2095
        %v2144 = vmul.f32 %v2120, %v2096
        %v2145 = vmul.f32 %v2121, %v2097
        %v2146 = vmul.f32 %v2122, %v2098
        %v2147 = vmul.f32 %v2123, %v2099
        %v2148 = vmul.f32 %v2124, %v2100
        %v2149 = vmul.f32 %v2125, %v2101
        %v2150 = vmul.f32 %v2126, %v2102
        %v2151 = vmul.f32 %v2127, %v2103
        %v2152 = vmul.f32 %v2128, %v2104
        %v2153 = vmul.f32 %v2129, %v2105
        %v2154 = vmul.f32 %v2130, %v2106
        %v2155 = vmul.f32 %v2131, %v2107
        %v2156 = vmul.f32 %v2132, %v2108
        %v2157 = vmul.f32 %v2133, %v2109
        %v2158 = vmul.f32 %v2134, %v2110
        %v2159 = vmul.f32 %v2135, %v2111
        %v2160 = vmul.f32 %v2136, %v2112
        %v2161 = vmul.f32 %v2137, %v2113
        %v2162 = vmul.f32 %v2138, %v2114
        %v2163 = vld [vmem:[%s7] sm:$0xff]
        %v2164 = vld [vmem:[%s7 + $0x8] sm:$0xff]
        %v2165 = vld [vmem:[%s7 + $0x10] sm:$0xff]
        %v2166 = vld [vmem:[%s8] sm:$0xff]
        %v2167 = vld [vmem:[%s8 + $0x8] sm:$0xff]
        %v2168 = vld [vmem:[%s8 + $0x10] sm:$0xff]
        %2170 = vset.pattern.permute.xlu0 0
        %2171 = vperm.xlu0 %2170, %v2166
        %v2172 = vpop.permute.xlu0 %2171
        %2175 = vset.pattern.permute.xlu0 0
        %2176 = vperm.xlu0 %2175, %v2167
        %v2177 = vpop.permute.xlu0 %2176
        %2180 = vset.pattern.permute.xlu0 0
        %2181 = vperm.xlu0 %2180, %v2168
        %v2182 = vpop.permute.xlu0 %2181
        %v2185 = vsel %vm1654, %v2163, 0
        %v2188 = vsel %vm1654, %v2164, 0
        %v2191 = vsel %vm1654, %v2165, 0
        %2193 = vmatprep.subr.mxu0 0.0
        %2194 = vmatpush1.msra.mxu0 0.0
        %2195 = vmatprep.subr.mxu0 0.0
        %2196 = vmatpush1.msra.mxu0 0.0
        %2197 = vmatprep.subr.mxu0 0.0
        %2198 = vmatpush1.msra.mxu0 0.0
        %2199 = vmatprep.subr.mxu0 0.0
        %2200 = vmatpush1.msra.mxu0 0.0
        %2201 = vmatprep.subr.mxu0 0.0
        %2202 = vmatpush1.msra.mxu0 0.0
        %2203 = vmatprep.subr.mxu0 0.0
        %2204 = vmatpush1.msra.mxu0 0.0
        %2205 = vmatprep.subr.mxu0 0.0
        %2206 = vmatpush1.msra.mxu0 0.0
        %2207 = vmatprep.subr.mxu0 0.0
        %2208 = vmatpush1.msra.mxu0 0.0
        %2209 = vmatprep.subr.mxu0 0.0
        %2210 = vmatpush1.msra.mxu0 0.0
        %2211 = vmatprep.subr.mxu0 0.0
        %2212 = vmatpush1.msra.mxu0 0.0
        %2213 = vmatprep.subr.mxu0 %v2160
        %2214 = vmatpush1.msra.mxu0 %v2159
        %2215 = vmatprep.subr.mxu0 %v2156
        %2216 = vmatpush1.msra.mxu0 %v2155
        %2217 = vmatprep.subr.mxu0 %v2152
        %2218 = vmatpush1.msra.mxu0 %v2151
        %2219 = vmatprep.subr.mxu0 %v2148
        %2220 = vmatpush1.msra.mxu0 %v2147
        %2221 = vmatprep.subr.mxu0 %v2144
        %2222 = vmatpush1.msra.mxu0 %v2143
        %2223 = vmatprep.subr.mxu0 %v2140
        %2224 = vmatpush1.msra.mxu0 %v2139
        %2225 = vmatprep.subr.mxu0 0.0
        %2226 = vmatpush2.msra.mxu0 0.0
        %2227 = vmatprep.subr.mxu0 0.0
        %2228 = vmatpush2.msra.mxu0 0.0
        %2229 = vmatprep.subr.mxu0 0.0
        %2230 = vmatpush2.msra.mxu0 0.0
        %2231 = vmatprep.subr.mxu0 0.0
        %2232 = vmatpush2.msra.mxu0 0.0
        %2233 = vmatprep.subr.mxu0 0.0
        %2234 = vmatpush2.msra.mxu0 0.0
        %2235 = vmatprep.subr.mxu0 0.0
        %2236 = vmatpush2.msra.mxu0 0.0
        %2237 = vmatprep.subr.mxu0 0.0
        %2238 = vmatpush2.msra.mxu0 0.0
        %2239 = vmatprep.subr.mxu0 0.0
        %2240 = vmatpush2.msra.mxu0 0.0
        %2241 = vmatprep.subr.mxu0 0.0
        %2242 = vmatpush2.msra.mxu0 0.0
        %2243 = vmatprep.subr.mxu0 0.0
        %2244 = vmatpush2.msra.mxu0 0.0
        %2245 = vmatprep.subr.mxu0 0.0
        %2246 = vmatpush2.msra.mxu0 0.0
        %2247 = vmatprep.subr.mxu0 0.0
        %2248 = vmatpush2.msra.mxu0 0.0
        %2249 = vmatprep.subr.mxu0 0.0
        %2250 = vmatpush2.msra.mxu0 0.0
        %2251 = vmatprep.subr.mxu0 0.0
        %2252 = vmatpush2.msra.mxu0 0.0
        %2253 = vmatprep.subr.mxu0 0.0
        %2254 = vmatpush2.msra.mxu0 0.0
        %2255 = vmatprep.subr.mxu0 0.0
        %2256 = vmatpush2.msra.mxu0 0.0
        %2257 = vmatprep.mubr.f32.mxu0 0.0
        %2258 = vmatmul.mubr.f32.gmra.mxu0 %v2185
        %v2259 = vpop.f32.mrf.mxu0
        %v2260 = vadd.f32 %v2172, %v2259
        %v2261 = vpop.f32.mrf.mxu0
        %v2262 = vadd.f32 %v2172, %v2261
        %2263 = vmatprep.mubr.f32.mxu0 0.0
        %2264 = vmatmul.mubr.f32.gmra.mxu0 %v2188
        %v2265 = vpop.f32.mrf.mxu0
        %v2266 = vadd.f32 %v2177, %v2265
        %v2267 = vpop.f32.mrf.mxu0
        %v2268 = vadd.f32 %v2177, %v2267
        %2269 = vmatprep.mubr.f32.mxu0 0.0
        %2270 = vmatmul.mubr.f32.gmra.mxu0 %v2191
        %v2271 = vpop.f32.mrf.mxu0
        %v2272 = vadd.f32 %v2182, %v2271
        %v2273 = vpop.f32.mrf.mxu0
        %v2274 = vadd.f32 %v2182, %v2273
        %2275 = vdwg.mxu0
        %2276 = vmatprep.subr.mxu0 0.0
        %2277 = vmatpush1.msra.mxu0 0.0
        %2278 = vmatprep.subr.mxu0 0.0
        %2279 = vmatpush1.msra.mxu0 0.0
        %2280 = vmatprep.subr.mxu0 0.0
        %2281 = vmatpush1.msra.mxu0 0.0
        %2282 = vmatprep.subr.mxu0 0.0
        %2283 = vmatpush1.msra.mxu0 0.0
        %2284 = vmatprep.subr.mxu0 0.0
        %2285 = vmatpush1.msra.mxu0 0.0
        %2286 = vmatprep.subr.mxu0 0.0
        %2287 = vmatpush1.msra.mxu0 0.0
        %2288 = vmatprep.subr.mxu0 0.0
        %2289 = vmatpush1.msra.mxu0 0.0
        %2290 = vmatprep.subr.mxu0 0.0
        %2291 = vmatpush1.msra.mxu0 0.0
        %2292 = vmatprep.subr.mxu0 0.0
        %2293 = vmatpush1.msra.mxu0 0.0
        %2294 = vmatprep.subr.mxu0 0.0
        %2295 = vmatpush1.msra.mxu0 0.0
        %2296 = vmatprep.subr.mxu0 %v2162
        %2297 = vmatpush1.msra.mxu0 %v2161
        %2298 = vmatprep.subr.mxu0 %v2158
        %2299 = vmatpush1.msra.mxu0 %v2157
        %2300 = vmatprep.subr.mxu0 %v2154
        %2301 = vmatpush1.msra.mxu0 %v2153
        %2302 = vmatprep.subr.mxu0 %v2150
        %2303 = vmatpush1.msra.mxu0 %v2149
        %2304 = vmatprep.subr.mxu0 %v2146
        %2305 = vmatpush1.msra.mxu0 %v2145
        %2306 = vmatprep.subr.mxu0 %v2142
        %2307 = vmatpush1.msra.mxu0 %v2141
        %2308 = vmatprep.subr.mxu0 0.0
        %2309 = vmatpush2.msra.mxu0 0.0
        %2310 = vmatprep.subr.mxu0 0.0
        %2311 = vmatpush2.msra.mxu0 0.0
        %2312 = vmatprep.subr.mxu0 0.0
        %2313 = vmatpush2.msra.mxu0 0.0
        %2314 = vmatprep.subr.mxu0 0.0
        %2315 = vmatpush2.msra.mxu0 0.0
        %2316 = vmatprep.subr.mxu0 0.0
        %2317 = vmatpush2.msra.mxu0 0.0
        %2318 = vmatprep.subr.mxu0 0.0
        %2319 = vmatpush2.msra.mxu0 0.0
        %2320 = vmatprep.subr.mxu0 0.0
        %2321 = vmatpush2.msra.mxu0 0.0
        %2322 = vmatprep.subr.mxu0 0.0
        %2323 = vmatpush2.msra.mxu0 0.0
        %2324 = vmatprep.subr.mxu0 0.0
        %2325 = vmatpush2.msra.mxu0 0.0
        %2326 = vmatprep.subr.mxu0 0.0
        %2327 = vmatpush2.msra.mxu0 0.0
        %2328 = vmatprep.subr.mxu0 0.0
        %2329 = vmatpush2.msra.mxu0 0.0
        %2330 = vmatprep.subr.mxu0 0.0
        %2331 = vmatpush2.msra.mxu0 0.0
        %2332 = vmatprep.subr.mxu0 0.0
        %2333 = vmatpush2.msra.mxu0 0.0
        %2334 = vmatprep.subr.mxu0 0.0
        %2335 = vmatpush2.msra.mxu0 0.0
        %2336 = vmatprep.subr.mxu0 0.0
        %2337 = vmatpush2.msra.mxu0 0.0
        %2338 = vmatprep.subr.mxu0 0.0
        %2339 = vmatpush2.msra.mxu0 0.0
        %2340 = vmatprep.mubr.f32.mxu0 0.0
        %2341 = vmatmul.mubr.f32.gmra.mxu0 %v2185
        %v2342 = vpop.f32.mrf.mxu0
        %v2343 = vadd.f32 %v2172, %v2342
        %v2344 = vpop.f32.mrf.mxu0
        %v2345 = vadd.f32 %v2172, %v2344
        %2346 = vmatprep.mubr.f32.mxu0 0.0
        %2347 = vmatmul.mubr.f32.gmra.mxu0 %v2188
        %v2348 = vpop.f32.mrf.mxu0
        %v2349 = vadd.f32 %v2177, %v2348
        %v2350 = vpop.f32.mrf.mxu0
        %v2351 = vadd.f32 %v2177, %v2350
        %2352 = vmatprep.mubr.f32.mxu0 0.0
        %2353 = vmatmul.mubr.f32.gmra.mxu0 %v2191
        %v2354 = vpop.f32.mrf.mxu0
        %v2355 = vadd.f32 %v2182, %v2354
        %v2356 = vpop.f32.mrf.mxu0
        %v2357 = vadd.f32 %v2182, %v2356
        %2358 = vdwg.mxu0
        %v2359 = vmin.f32 %v2260, 40.0
        %v2360 = vmin.f32 %v2262, 40.0
        %v2361 = vmin.f32 %v2343, 40.0
        %v2362 = vmin.f32 %v2345, 40.0
        %v2363 = vmin.f32 %v2266, 40.0
        %v2364 = vmin.f32 %v2268, 40.0
        %v2365 = vmin.f32 %v2349, 40.0
        %v2366 = vmin.f32 %v2351, 40.0
        %v2367 = vmin.f32 %v2272, 40.0
        %v2368 = vmin.f32 %v2274, 40.0
        %v2369 = vmin.f32 %v2355, 40.0
        %v2370 = vmin.f32 %v2357, 40.0
        %v2371 = vmul.f32 %v2359, 1.442695
        %v2372 = vpow.pop %v2371
        %v2373 = vmul.f32 %v2360, 1.442695
        %v2374 = vpow.pop %v2373
        %v2375 = vmul.f32 %v2361, 1.442695
        %v2376 = vpow.pop %v2375
        %v2377 = vmul.f32 %v2362, 1.442695
        %v2378 = vpow.pop %v2377
        %v2379 = vmul.f32 %v2363, 1.442695
        %v2380 = vpow.pop %v2379
        %v2381 = vmul.f32 %v2364, 1.442695
        %v2382 = vpow.pop %v2381
        %v2383 = vmul.f32 %v2365, 1.442695
        %v2384 = vpow.pop %v2383
        %v2385 = vmul.f32 %v2366, 1.442695
        %v2386 = vpow.pop %v2385
        %v2387 = vmul.f32 %v2367, 1.442695
        %v2388 = vpow.pop %v2387
        %v2389 = vmul.f32 %v2368, 1.442695
        %v2390 = vpow.pop %v2389
        %v2391 = vmul.f32 %v2369, 1.442695
        %v2392 = vpow.pop %v2391
        %v2393 = vmul.f32 %v2370, 1.442695
        %v2394 = vpow.pop %v2393
        %v2395 = vadd.f32 %v2372, 2.0
        %v2396 = vadd.f32 %v2374, 2.0
        %v2397 = vadd.f32 %v2376, 2.0
        %v2398 = vadd.f32 %v2378, 2.0
        %v2399 = vadd.f32 %v2380, 2.0
        %v2400 = vadd.f32 %v2382, 2.0
        %v2401 = vadd.f32 %v2384, 2.0
        %v2402 = vadd.f32 %v2386, 2.0
        %v2403 = vadd.f32 %v2388, 2.0
        %v2404 = vadd.f32 %v2390, 2.0
        %v2405 = vadd.f32 %v2392, 2.0
        %v2406 = vadd.f32 %v2394, 2.0
        %v2407 = vmul.f32 %v2372, %v2395
        %v2408 = vmul.f32 %v2374, %v2396
        %v2409 = vmul.f32 %v2376, %v2397
        %v2410 = vmul.f32 %v2378, %v2398
        %v2411 = vmul.f32 %v2380, %v2399
        %v2412 = vmul.f32 %v2382, %v2400
        %v2413 = vmul.f32 %v2384, %v2401
        %v2414 = vmul.f32 %v2386, %v2402
        %v2415 = vmul.f32 %v2388, %v2403
        %v2416 = vmul.f32 %v2390, %v2404
        %v2417 = vmul.f32 %v2392, %v2405
        %v2418 = vmul.f32 %v2394, %v2406
        %v2419 = vadd.f32 %v2407, 2.0
        %v2420 = vadd.f32 %v2408, 2.0
        %v2421 = vadd.f32 %v2409, 2.0
        %v2422 = vadd.f32 %v2410, 2.0
        %v2423 = vadd.f32 %v2411, 2.0
        %v2424 = vadd.f32 %v2412, 2.0
        %v2425 = vadd.f32 %v2413, 2.0
        %v2426 = vadd.f32 %v2414, 2.0
        %v2427 = vadd.f32 %v2415, 2.0
        %v2428 = vadd.f32 %v2416, 2.0
        %v2429 = vadd.f32 %v2417, 2.0
        %v2430 = vadd.f32 %v2418, 2.0
        %v2431 = vrcp.pop %v2419
        %v2432 = vrcp.pop %v2420
        %v2433 = vrcp.pop %v2421
        %v2434 = vrcp.pop %v2422
        %v2435 = vrcp.pop %v2423
        %v2436 = vrcp.pop %v2424
        %v2437 = vrcp.pop %v2425
        %v2438 = vrcp.pop %v2426
        %v2439 = vrcp.pop %v2427
        %v2440 = vrcp.pop %v2428
        %v2441 = vrcp.pop %v2429
        %v2442 = vrcp.pop %v2430
        %v2443 = vmul.f32 %v2419, %v2431
        %v2444 = vmul.f32 %v2420, %v2432
        %v2445 = vmul.f32 %v2421, %v2433
        %v2446 = vmul.f32 %v2422, %v2434
        %v2447 = vmul.f32 %v2423, %v2435
        %v2448 = vmul.f32 %v2424, %v2436
        %v2449 = vmul.f32 %v2425, %v2437
        %v2450 = vmul.f32 %v2426, %v2438
        %v2451 = vmul.f32 %v2427, %v2439
        %v2452 = vmul.f32 %v2428, %v2440
        %v2453 = vmul.f32 %v2429, %v2441
        %v2454 = vmul.f32 %v2430, %v2442
        %v2455 = vsub.f32 2.0, %v2443
        %v2456 = vsub.f32 2.0, %v2444
        %v2457 = vsub.f32 2.0, %v2445
        %v2458 = vsub.f32 2.0, %v2446
        %v2459 = vsub.f32 2.0, %v2447
        %v2460 = vsub.f32 2.0, %v2448
        %v2461 = vsub.f32 2.0, %v2449
        %v2462 = vsub.f32 2.0, %v2450
        %v2463 = vsub.f32 2.0, %v2451
        %v2464 = vsub.f32 2.0, %v2452
        %v2465 = vsub.f32 2.0, %v2453
        %v2466 = vsub.f32 2.0, %v2454
        %v2467 = vmul.f32 %v2431, %v2455
        %v2468 = vmul.f32 %v2432, %v2456
        %v2469 = vmul.f32 %v2433, %v2457
        %v2470 = vmul.f32 %v2434, %v2458
        %v2471 = vmul.f32 %v2435, %v2459
        %v2472 = vmul.f32 %v2436, %v2460
        %v2473 = vmul.f32 %v2437, %v2461
        %v2474 = vmul.f32 %v2438, %v2462
        %v2475 = vmul.f32 %v2439, %v2463
        %v2476 = vmul.f32 %v2440, %v2464
        %v2477 = vmul.f32 %v2441, %v2465
        %v2478 = vmul.f32 %v2442, %v2466
        %v2479 = vmul.f32 %v2260, %v2407
        %v2480 = vmul.f32 %v2262, %v2408
        %v2481 = vmul.f32 %v2343, %v2409
        %v2482 = vmul.f32 %v2345, %v2410
        %v2483 = vmul.f32 %v2266, %v2411
        %v2484 = vmul.f32 %v2268, %v2412
        %v2485 = vmul.f32 %v2349, %v2413
        %v2486 = vmul.f32 %v2351, %v2414
        %v2487 = vmul.f32 %v2272, %v2415
        %v2488 = vmul.f32 %v2274, %v2416
        %v2489 = vmul.f32 %v2355, %v2417
        %v2490 = vmul.f32 %v2357, %v2418
        %v2491 = vmul.f32 %v2479, %v2467
        %v2492 = vmul.f32 %v2480, %v2468
        %v2493 = vmul.f32 %v2481, %v2469
        %v2494 = vmul.f32 %v2482, %v2470
        %v2495 = vmul.f32 %v2483, %v2471
        %v2496 = vmul.f32 %v2484, %v2472
        %v2497 = vmul.f32 %v2485, %v2473
        %v2498 = vmul.f32 %v2486, %v2474
        %v2499 = vmul.f32 %v2487, %v2475
        %v2500 = vmul.f32 %v2488, %v2476
        %v2501 = vmul.f32 %v2489, %v2477
        %v2502 = vmul.f32 %v2490, %v2478
        %v2503 = vld [vmem:[%s9] sm:$0xff]
        %v2504 = vld [vmem:[%s9 + $0x8] sm:$0xff]
        %v2505 = vld [vmem:[%s9 + $0x10] sm:$0xff]
        %v2506 = vld [vmem:[%s10] sm:$0xff]
        %v2507 = vld [vmem:[%s10 + $0x8] sm:$0xff]
        %v2508 = vld [vmem:[%s10 + $0x10] sm:$0xff]
        %2510 = vset.pattern.permute.xlu0 0
        %2511 = vperm.xlu0 %2510, %v2506
        %v2512 = vpop.permute.xlu0 %2511
        %2515 = vset.pattern.permute.xlu0 0
        %2516 = vperm.xlu0 %2515, %v2507
        %v2517 = vpop.permute.xlu0 %2516
        %2520 = vset.pattern.permute.xlu0 0
        %2521 = vperm.xlu0 %2520, %v2508
        %v2522 = vpop.permute.xlu0 %2521
        %v2525 = vsel %vm1103, %v2503, 0
        %v2528 = vsel %vm1103, %v2504, 0
        %v2531 = vsel %vm1103, %v2505, 0
        %2533 = vmatprep.subr.mxu0 0.0
        %2534 = vmatpush1.msra.mxu0 0.0
        %2535 = vmatprep.subr.mxu0 0.0
        %2536 = vmatpush1.msra.mxu0 0.0
        %2537 = vmatprep.subr.mxu0 0.0
        %2538 = vmatpush1.msra.mxu0 0.0
        %2539 = vmatprep.subr.mxu0 0.0
        %2540 = vmatpush1.msra.mxu0 0.0
        %2541 = vmatprep.subr.mxu0 0.0
        %2542 = vmatpush1.msra.mxu0 0.0
        %2543 = vmatprep.subr.mxu0 0.0
        %2544 = vmatpush1.msra.mxu0 0.0
        %2545 = vmatprep.subr.mxu0 0.0
        %2546 = vmatpush1.msra.mxu0 0.0
        %2547 = vmatprep.subr.mxu0 0.0
        %2548 = vmatpush1.msra.mxu0 0.0
        %2549 = vmatprep.subr.mxu0 0.0
        %2550 = vmatpush1.msra.mxu0 0.0
        %2551 = vmatprep.subr.mxu0 0.0
        %2552 = vmatpush1.msra.mxu0 0.0
        %2553 = vmatprep.subr.mxu0 0.0
        %2554 = vmatpush1.msra.mxu0 0.0
        %2555 = vmatprep.subr.mxu0 0.0
        %2556 = vmatpush1.msra.mxu0 0.0
        %2557 = vmatprep.subr.mxu0 0.0
        %2558 = vmatpush1.msra.mxu0 0.0
        %2559 = vmatprep.subr.mxu0 %v2500
        %2560 = vmatpush1.msra.mxu0 %v2499
        %2561 = vmatprep.subr.mxu0 %v2496
        %2562 = vmatpush1.msra.mxu0 %v2495
        %2563 = vmatprep.subr.mxu0 %v2492
        %2564 = vmatpush1.msra.mxu0 %v2491
        %2565 = vmatprep.subr.mxu0 0.0
        %2566 = vmatpush2.msra.mxu0 0.0
        %2567 = vmatprep.subr.mxu0 0.0
        %2568 = vmatpush2.msra.mxu0 0.0
        %2569 = vmatprep.subr.mxu0 0.0
        %2570 = vmatpush2.msra.mxu0 0.0
        %2571 = vmatprep.subr.mxu0 0.0
        %2572 = vmatpush2.msra.mxu0 0.0
        %2573 = vmatprep.subr.mxu0 0.0
        %2574 = vmatpush2.msra.mxu0 0.0
        %2575 = vmatprep.subr.mxu0 0.0
        %2576 = vmatpush2.msra.mxu0 0.0
        %2577 = vmatprep.subr.mxu0 0.0
        %2578 = vmatpush2.msra.mxu0 0.0
        %2579 = vmatprep.subr.mxu0 0.0
        %2580 = vmatpush2.msra.mxu0 0.0
        %2581 = vmatprep.subr.mxu0 0.0
        %2582 = vmatpush2.msra.mxu0 0.0
        %2583 = vmatprep.subr.mxu0 0.0
        %2584 = vmatpush2.msra.mxu0 0.0
        %2585 = vmatprep.subr.mxu0 0.0
        %2586 = vmatpush2.msra.mxu0 0.0
        %2587 = vmatprep.subr.mxu0 0.0
        %2588 = vmatpush2.msra.mxu0 0.0
        %2589 = vmatprep.subr.mxu0 0.0
        %2590 = vmatpush2.msra.mxu0 0.0
        %2591 = vmatprep.subr.mxu0 0.0
        %2592 = vmatpush2.msra.mxu0 0.0
        %2593 = vmatprep.subr.mxu0 0.0
        %2594 = vmatpush2.msra.mxu0 0.0
        %2595 = vmatprep.subr.mxu0 0.0
        %2596 = vmatpush2.msra.mxu0 0.0
        %2597 = vmatprep.mubr.f32.mxu0 0.0
        %2598 = vmatmul.mubr.f32.gmra.mxu0 %v2525
        %v2599 = vpop.f32.mrf.mxu0
        %v2600 = vadd.f32 %v2512, %v2599
        %v2601 = vpop.f32.mrf.mxu0
        %v2602 = vadd.f32 %v2512, %v2601
        %2603 = vmatprep.mubr.f32.mxu0 0.0
        %2604 = vmatmul.mubr.f32.gmra.mxu0 %v2528
        %v2605 = vpop.f32.mrf.mxu0
        %v2606 = vadd.f32 %v2517, %v2605
        %v2607 = vpop.f32.mrf.mxu0
        %v2608 = vadd.f32 %v2517, %v2607
        %2609 = vmatprep.mubr.f32.mxu0 0.0
        %2610 = vmatmul.mubr.f32.gmra.mxu0 %v2531
        %v2611 = vpop.f32.mrf.mxu0
        %v2612 = vadd.f32 %v2522, %v2611
        %v2613 = vpop.f32.mrf.mxu0
        %v2614 = vadd.f32 %v2522, %v2613
        %2615 = vdwg.mxu0
        %2616 = vmatprep.subr.mxu0 0.0
        %2617 = vmatpush1.msra.mxu0 0.0
        %2618 = vmatprep.subr.mxu0 0.0
        %2619 = vmatpush1.msra.mxu0 0.0
        %2620 = vmatprep.subr.mxu0 0.0
        %2621 = vmatpush1.msra.mxu0 0.0
        %2622 = vmatprep.subr.mxu0 0.0
        %2623 = vmatpush1.msra.mxu0 0.0
        %2624 = vmatprep.subr.mxu0 0.0
        %2625 = vmatpush1.msra.mxu0 0.0
        %2626 = vmatprep.subr.mxu0 0.0
        %2627 = vmatpush1.msra.mxu0 0.0
        %2628 = vmatprep.subr.mxu0 0.0
        %2629 = vmatpush1.msra.mxu0 0.0
        %2630 = vmatprep.subr.mxu0 0.0
        %2631 = vmatpush1.msra.mxu0 0.0
        %2632 = vmatprep.subr.mxu0 0.0
        %2633 = vmatpush1.msra.mxu0 0.0
        %2634 = vmatprep.subr.mxu0 0.0
        %2635 = vmatpush1.msra.mxu0 0.0
        %2636 = vmatprep.subr.mxu0 0.0
        %2637 = vmatpush1.msra.mxu0 0.0
        %2638 = vmatprep.subr.mxu0 0.0
        %2639 = vmatpush1.msra.mxu0 0.0
        %2640 = vmatprep.subr.mxu0 0.0
        %2641 = vmatpush1.msra.mxu0 0.0
        %2642 = vmatprep.subr.mxu0 %v2502
        %2643 = vmatpush1.msra.mxu0 %v2501
        %2644 = vmatprep.subr.mxu0 %v2498
        %2645 = vmatpush1.msra.mxu0 %v2497
        %2646 = vmatprep.subr.mxu0 %v2494
        %2647 = vmatpush1.msra.mxu0 %v2493
        %2648 = vmatprep.subr.mxu0 0.0
        %2649 = vmatpush2.msra.mxu0 0.0
        %2650 = vmatprep.subr.mxu0 0.0
        %2651 = vmatpush2.msra.mxu0 0.0
        %2652 = vmatprep.subr.mxu0 0.0
        %2653 = vmatpush2.msra.mxu0 0.0
        %2654 = vmatprep.subr.mxu0 0.0
        %2655 = vmatpush2.msra.mxu0 0.0
        %2656 = vmatprep.subr.mxu0 0.0
        %2657 = vmatpush2.msra.mxu0 0.0
        %2658 = vmatprep.subr.mxu0 0.0
        %2659 = vmatpush2.msra.mxu0 0.0
        %2660 = vmatprep.subr.mxu0 0.0
        %2661 = vmatpush2.msra.mxu0 0.0
        %2662 = vmatprep.subr.mxu0 0.0
        %2663 = vmatpush2.msra.mxu0 0.0
        %2664 = vmatprep.subr.mxu0 0.0
        %2665 = vmatpush2.msra.mxu0 0.0
        %2666 = vmatprep.subr.mxu0 0.0
        %2667 = vmatpush2.msra.mxu0 0.0
        %2668 = vmatprep.subr.mxu0 0.0
        %2669 = vmatpush2.msra.mxu0 0.0
        %2670 = vmatprep.subr.mxu0 0.0
        %2671 = vmatpush2.msra.mxu0 0.0
        %2672 = vmatprep.subr.mxu0 0.0
        %2673 = vmatpush2.msra.mxu0 0.0
        %2674 = vmatprep.subr.mxu0 0.0
        %2675 = vmatpush2.msra.mxu0 0.0
        %2676 = vmatprep.subr.mxu0 0.0
        %2677 = vmatpush2.msra.mxu0 0.0
        %2678 = vmatprep.subr.mxu0 0.0
        %2679 = vmatpush2.msra.mxu0 0.0
        %2680 = vmatprep.mubr.f32.mxu0 0.0
        %2681 = vmatmul.mubr.f32.gmra.mxu0 %v2525
        %v2682 = vpop.f32.mrf.mxu0
        %v2683 = vadd.f32 %v2512, %v2682
        %v2684 = vpop.f32.mrf.mxu0
        %v2685 = vadd.f32 %v2512, %v2684
        %2686 = vmatprep.mubr.f32.mxu0 0.0
        %2687 = vmatmul.mubr.f32.gmra.mxu0 %v2528
        %v2688 = vpop.f32.mrf.mxu0
        %v2689 = vadd.f32 %v2517, %v2688
        %v2690 = vpop.f32.mrf.mxu0
        %v2691 = vadd.f32 %v2517, %v2690
        %2692 = vmatprep.mubr.f32.mxu0 0.0
        %2693 = vmatmul.mubr.f32.gmra.mxu0 %v2531
        %v2694 = vpop.f32.mrf.mxu0
        %v2695 = vadd.f32 %v2522, %v2694
        %v2696 = vpop.f32.mrf.mxu0
        %v2697 = vadd.f32 %v2522, %v2696
        %2698 = vdwg.mxu0
        %v2699 = vmin.f32 %v2600, 40.0
        %v2700 = vmin.f32 %v2602, 40.0
        %v2701 = vmin.f32 %v2683, 40.0
        %v2702 = vmin.f32 %v2685, 40.0
        %v2703 = vmin.f32 %v2606, 40.0
        %v2704 = vmin.f32 %v2608, 40.0
        %v2705 = vmin.f32 %v2689, 40.0
        %v2706 = vmin.f32 %v2691, 40.0
        %v2707 = vmin.f32 %v2612, 40.0
        %v2708 = vmin.f32 %v2614, 40.0
        %v2709 = vmin.f32 %v2695, 40.0
        %v2710 = vmin.f32 %v2697, 40.0
        %v2711 = vmul.f32 %v2699, 1.442695
        %v2712 = vpow.pop %v2711
        %v2713 = vmul.f32 %v2700, 1.442695
        %v2714 = vpow.pop %v2713
        %v2715 = vmul.f32 %v2701, 1.442695
        %v2716 = vpow.pop %v2715
        %v2717 = vmul.f32 %v2702, 1.442695
        %v2718 = vpow.pop %v2717
        %v2719 = vmul.f32 %v2703, 1.442695
        %v2720 = vpow.pop %v2719
        %v2721 = vmul.f32 %v2704, 1.442695
        %v2722 = vpow.pop %v2721
        %v2723 = vmul.f32 %v2705, 1.442695
        %v2724 = vpow.pop %v2723
        %v2725 = vmul.f32 %v2706, 1.442695
        %v2726 = vpow.pop %v2725
        %v2727 = vmul.f32 %v2707, 1.442695
        %v2728 = vpow.pop %v2727
        %v2729 = vmul.f32 %v2708, 1.442695
        %v2730 = vpow.pop %v2729
        %v2731 = vmul.f32 %v2709, 1.442695
        %v2732 = vpow.pop %v2731
        %v2733 = vmul.f32 %v2710, 1.442695
        %v2734 = vpow.pop %v2733
        %v2735 = vadd.f32 %v2712, 2.0
        %v2736 = vadd.f32 %v2714, 2.0
        %v2737 = vadd.f32 %v2716, 2.0
        %v2738 = vadd.f32 %v2718, 2.0
        %v2739 = vadd.f32 %v2720, 2.0
        %v2740 = vadd.f32 %v2722, 2.0
        %v2741 = vadd.f32 %v2724, 2.0
        %v2742 = vadd.f32 %v2726, 2.0
        %v2743 = vadd.f32 %v2728, 2.0
        %v2744 = vadd.f32 %v2730, 2.0
        %v2745 = vadd.f32 %v2732, 2.0
        %v2746 = vadd.f32 %v2734, 2.0
        %v2747 = vmul.f32 %v2712, %v2735
        %v2748 = vmul.f32 %v2714, %v2736
        %v2749 = vmul.f32 %v2716, %v2737
        %v2750 = vmul.f32 %v2718, %v2738
        %v2751 = vmul.f32 %v2720, %v2739
        %v2752 = vmul.f32 %v2722, %v2740
        %v2753 = vmul.f32 %v2724, %v2741
        %v2754 = vmul.f32 %v2726, %v2742
        %v2755 = vmul.f32 %v2728, %v2743
        %v2756 = vmul.f32 %v2730, %v2744
        %v2757 = vmul.f32 %v2732, %v2745
        %v2758 = vmul.f32 %v2734, %v2746
        %v2759 = vadd.f32 %v2747, 2.0
        %v2760 = vadd.f32 %v2748, 2.0
        %v2761 = vadd.f32 %v2749, 2.0
        %v2762 = vadd.f32 %v2750, 2.0
        %v2763 = vadd.f32 %v2751, 2.0
        %v2764 = vadd.f32 %v2752, 2.0
        %v2765 = vadd.f32 %v2753, 2.0
        %v2766 = vadd.f32 %v2754, 2.0
        %v2767 = vadd.f32 %v2755, 2.0
        %v2768 = vadd.f32 %v2756, 2.0
        %v2769 = vadd.f32 %v2757, 2.0
        %v2770 = vadd.f32 %v2758, 2.0
        %v2771 = vrcp.pop %v2759
        %v2772 = vrcp.pop %v2760
        %v2773 = vrcp.pop %v2761
        %v2774 = vrcp.pop %v2762
        %v2775 = vrcp.pop %v2763
        %v2776 = vrcp.pop %v2764
        %v2777 = vrcp.pop %v2765
        %v2778 = vrcp.pop %v2766
        %v2779 = vrcp.pop %v2767
        %v2780 = vrcp.pop %v2768
        %v2781 = vrcp.pop %v2769
        %v2782 = vrcp.pop %v2770
        %v2783 = vmul.f32 %v2759, %v2771
        %v2784 = vmul.f32 %v2760, %v2772
        %v2785 = vmul.f32 %v2761, %v2773
        %v2786 = vmul.f32 %v2762, %v2774
        %v2787 = vmul.f32 %v2763, %v2775
        %v2788 = vmul.f32 %v2764, %v2776
        %v2789 = vmul.f32 %v2765, %v2777
        %v2790 = vmul.f32 %v2766, %v2778
        %v2791 = vmul.f32 %v2767, %v2779
        %v2792 = vmul.f32 %v2768, %v2780
        %v2793 = vmul.f32 %v2769, %v2781
        %v2794 = vmul.f32 %v2770, %v2782
        %v2795 = vsub.f32 2.0, %v2783
        %v2796 = vsub.f32 2.0, %v2784
        %v2797 = vsub.f32 2.0, %v2785
        %v2798 = vsub.f32 2.0, %v2786
        %v2799 = vsub.f32 2.0, %v2787
        %v2800 = vsub.f32 2.0, %v2788
        %v2801 = vsub.f32 2.0, %v2789
        %v2802 = vsub.f32 2.0, %v2790
        %v2803 = vsub.f32 2.0, %v2791
        %v2804 = vsub.f32 2.0, %v2792
        %v2805 = vsub.f32 2.0, %v2793
        %v2806 = vsub.f32 2.0, %v2794
        %v2807 = vmul.f32 %v2771, %v2795
        %v2808 = vmul.f32 %v2772, %v2796
        %v2809 = vmul.f32 %v2773, %v2797
        %v2810 = vmul.f32 %v2774, %v2798
        %v2811 = vmul.f32 %v2775, %v2799
        %v2812 = vmul.f32 %v2776, %v2800
        %v2813 = vmul.f32 %v2777, %v2801
        %v2814 = vmul.f32 %v2778, %v2802
        %v2815 = vmul.f32 %v2779, %v2803
        %v2816 = vmul.f32 %v2780, %v2804
        %v2817 = vmul.f32 %v2781, %v2805
        %v2818 = vmul.f32 %v2782, %v2806
        %v2819 = vmul.f32 %v2600, %v2747
        %v2820 = vmul.f32 %v2602, %v2748
        %v2821 = vmul.f32 %v2683, %v2749
        %v2822 = vmul.f32 %v2685, %v2750
        %v2823 = vmul.f32 %v2606, %v2751
        %v2824 = vmul.f32 %v2608, %v2752
        %v2825 = vmul.f32 %v2689, %v2753
        %v2826 = vmul.f32 %v2691, %v2754
        %v2827 = vmul.f32 %v2612, %v2755
        %v2828 = vmul.f32 %v2614, %v2756
        %v2829 = vmul.f32 %v2695, %v2757
        %v2830 = vmul.f32 %v2697, %v2758
        %v2831 = vmul.f32 %v2819, %v2807
        %v2832 = vmul.f32 %v2820, %v2808
        %v2833 = vmul.f32 %v2821, %v2809
        %v2834 = vmul.f32 %v2822, %v2810
        %v2835 = vmul.f32 %v2823, %v2811
        %v2836 = vmul.f32 %v2824, %v2812
        %v2837 = vmul.f32 %v2825, %v2813
        %v2838 = vmul.f32 %v2826, %v2814
        %v2839 = vmul.f32 %v2827, %v2815
        %v2840 = vmul.f32 %v2828, %v2816
        %v2841 = vmul.f32 %v2829, %v2817
        %v2842 = vmul.f32 %v2830, %v2818
        %v2843 = vld [vmem:[%s11] sm:$0x1]
        %v2844 = vld [vmem:[#allocation2] sm:$0x1]
        %2846 = vset.pattern.permute.xlu0 0
        %2847 = vperm.xlu0 %2846, %v2844
        %v2848 = vpop.permute.xlu0 %2847
        %v2850 = vlaneseq
        %v2851 = vshrl.u32 %v2850, 7
        %v2852 = vsub.s32 0, %v2851
        %v2853 = vrot.slane %v2848, %v2852
        %v2855 = vsel %vm1103, %v2843, 0
        %2857 = vmatprep.subr.mxu0 0.0
        %2858 = vmatpush1.msra.mxu0 0.0
        %2859 = vmatprep.subr.mxu0 0.0
        %2860 = vmatpush1.msra.mxu0 0.0
        %2861 = vmatprep.subr.mxu0 0.0
        %2862 = vmatpush1.msra.mxu0 0.0
        %2863 = vmatprep.subr.mxu0 0.0
        %2864 = vmatpush1.msra.mxu0 0.0
        %2865 = vmatprep.subr.mxu0 0.0
        %2866 = vmatpush1.msra.mxu0 0.0
        %2867 = vmatprep.subr.mxu0 0.0
        %2868 = vmatpush1.msra.mxu0 0.0
        %2869 = vmatprep.subr.mxu0 0.0
        %2870 = vmatpush1.msra.mxu0 0.0
        %2871 = vmatprep.subr.mxu0 0.0
        %2872 = vmatpush1.msra.mxu0 0.0
        %2873 = vmatprep.subr.mxu0 0.0
        %2874 = vmatpush1.msra.mxu0 0.0
        %2875 = vmatprep.subr.mxu0 0.0
        %2876 = vmatpush1.msra.mxu0 0.0
        %2877 = vmatprep.subr.mxu0 0.0
        %2878 = vmatpush1.msra.mxu0 0.0
        %2879 = vmatprep.subr.mxu0 0.0
        %2880 = vmatpush1.msra.mxu0 0.0
        %2881 = vmatprep.subr.mxu0 0.0
        %2882 = vmatpush1.msra.mxu0 0.0
        %2883 = vmatprep.subr.mxu0 %v2840
        %2884 = vmatpush1.msra.mxu0 %v2839
        %2885 = vmatprep.subr.mxu0 %v2836
        %2886 = vmatpush1.msra.mxu0 %v2835
        %2887 = vmatprep.subr.mxu0 %v2832
        %2888 = vmatpush1.msra.mxu0 %v2831
        %2889 = vmatprep.subr.mxu0 0.0
        %2890 = vmatpush2.msra.mxu0 0.0
        %2891 = vmatprep.subr.mxu0 0.0
        %2892 = vmatpush2.msra.mxu0 0.0
        %2893 = vmatprep.subr.mxu0 0.0
        %2894 = vmatpush2.msra.mxu0 0.0
        %2895 = vmatprep.subr.mxu0 0.0
        %2896 = vmatpush2.msra.mxu0 0.0
        %2897 = vmatprep.subr.mxu0 0.0
        %2898 = vmatpush2.msra.mxu0 0.0
        %2899 = vmatprep.subr.mxu0 0.0
        %2900 = vmatpush2.msra.mxu0 0.0
        %2901 = vmatprep.subr.mxu0 0.0
        %2902 = vmatpush2.msra.mxu0 0.0
        %2903 = vmatprep.subr.mxu0 0.0
        %2904 = vmatpush2.msra.mxu0 0.0
        %2905 = vmatprep.subr.mxu0 0.0
        %2906 = vmatpush2.msra.mxu0 0.0
        %2907 = vmatprep.subr.mxu0 0.0
        %2908 = vmatpush2.msra.mxu0 0.0
        %2909 = vmatprep.subr.mxu0 0.0
        %2910 = vmatpush2.msra.mxu0 0.0
        %2911 = vmatprep.subr.mxu0 0.0
        %2912 = vmatpush2.msra.mxu0 0.0
        %2913 = vmatprep.subr.mxu0 0.0
        %2914 = vmatpush2.msra.mxu0 0.0
        %2915 = vmatprep.subr.mxu0 0.0
        %2916 = vmatpush2.msra.mxu0 0.0
        %2917 = vmatprep.subr.mxu0 0.0
        %2918 = vmatpush2.msra.mxu0 0.0
        %2919 = vmatprep.subr.mxu0 0.0
        %2920 = vmatpush2.msra.mxu0 0.0
        %2921 = vmatprep.mubr.f32.mxu0 0.0
        %2922 = vmatmul.mubr.f32.gmra.mxu0 %v2855
        %v2923 = vpop.f32.mrf.mxu0
        %v2924 = vadd.f32 %v2853, %v2923
        %v2925 = vpop.f32.mrf.mxu0
        %v2926 = vadd.f32 %v2853, %v2925
        %2927 = vdwg.mxu0
        %2928 = vmatprep.subr.mxu0 0.0
        %2929 = vmatpush1.msra.mxu0 0.0
        %2930 = vmatprep.subr.mxu0 0.0
        %2931 = vmatpush1.msra.mxu0 0.0
        %2932 = vmatprep.subr.mxu0 0.0
        %2933 = vmatpush1.msra.mxu0 0.0
        %2934 = vmatprep.subr.mxu0 0.0
        %2935 = vmatpush1.msra.mxu0 0.0
        %2936 = vmatprep.subr.mxu0 0.0
        %2937 = vmatpush1.msra.mxu0 0.0
        %2938 = vmatprep.subr.mxu0 0.0
        %2939 = vmatpush1.msra.mxu0 0.0
        %2940 = vmatprep.subr.mxu0 0.0
        %2941 = vmatpush1.msra.mxu0 0.0
        %2942 = vmatprep.subr.mxu0 0.0
        %2943 = vmatpush1.msra.mxu0 0.0
        %2944 = vmatprep.subr.mxu0 0.0
        %2945 = vmatpush1.msra.mxu0 0.0
        %2946 = vmatprep.subr.mxu0 0.0
        %2947 = vmatpush1.msra.mxu0 0.0
        %2948 = vmatprep.subr.mxu0 0.0
        %2949 = vmatpush1.msra.mxu0 0.0
        %2950 = vmatprep.subr.mxu0 0.0
        %2951 = vmatpush1.msra.mxu0 0.0
        %2952 = vmatprep.subr.mxu0 0.0
        %2953 = vmatpush1.msra.mxu0 0.0
        %2954 = vmatprep.subr.mxu0 %v2842
        %2955 = vmatpush1.msra.mxu0 %v2841
        %2956 = vmatprep.subr.mxu0 %v2838
        %2957 = vmatpush1.msra.mxu0 %v2837
        %2958 = vmatprep.subr.mxu0 %v2834
        %2959 = vmatpush1.msra.mxu0 %v2833
        %2960 = vmatprep.subr.mxu0 0.0
        %2961 = vmatpush2.msra.mxu0 0.0
        %2962 = vmatprep.subr.mxu0 0.0
        %2963 = vmatpush2.msra.mxu0 0.0
        %2964 = vmatprep.subr.mxu0 0.0
        %2965 = vmatpush2.msra.mxu0 0.0
        %2966 = vmatprep.subr.mxu0 0.0
        %2967 = vmatpush2.msra.mxu0 0.0
        %2968 = vmatprep.subr.mxu0 0.0
        %2969 = vmatpush2.msra.mxu0 0.0
        %2970 = vmatprep.subr.mxu0 0.0
        %2971 = vmatpush2.msra.mxu0 0.0
        %2972 = vmatprep.subr.mxu0 0.0
        %2973 = vmatpush2.msra.mxu0 0.0
        %2974 = vmatprep.subr.mxu0 0.0
        %2975 = vmatpush2.msra.mxu0 0.0
        %2976 = vmatprep.subr.mxu0 0.0
        %2977 = vmatpush2.msra.mxu0 0.0
        %2978 = vmatprep.subr.mxu0 0.0
        %2979 = vmatpush2.msra.mxu0 0.0
        %2980 = vmatprep.subr.mxu0 0.0
        %2981 = vmatpush2.msra.mxu0 0.0
        %2982 = vmatprep.subr.mxu0 0.0
        %2983 = vmatpush2.msra.mxu0 0.0
        %2984 = vmatprep.subr.mxu0 0.0
        %2985 = vmatpush2.msra.mxu0 0.0
        %2986 = vmatprep.subr.mxu0 0.0
        %2987 = vmatpush2.msra.mxu0 0.0
        %2988 = vmatprep.subr.mxu0 0.0
        %2989 = vmatpush2.msra.mxu0 0.0
        %2990 = vmatprep.subr.mxu0 0.0
        %2991 = vmatpush2.msra.mxu0 0.0
        %2992 = vmatprep.mubr.f32.mxu0 0.0
        %2993 = vmatmul.mubr.f32.gmra.mxu0 %v2855
        %v2994 = vpop.f32.mrf.mxu0
        %v2995 = vadd.f32 %v2853, %v2994
        %v2996 = vpop.f32.mrf.mxu0
        %v2997 = vadd.f32 %v2853, %v2996
        %2998 = vdwg.mxu0
        %v3003 = vcombine.low %v2924, %v2926
        %v3004 = vcombine.low %v2995, %v2997
        %v3006 = vunpack.c.l.s4 1966171168
        %v3007 = vunpack.c.0.s8 %v3006
        %v3008 = vlaneseq
        %v3009 = vshrl.u32 %v3008, 7
        %v3010 = vsub.s32 %v3007, %v3009
        %v3011 = vrot.slane %v3003, %v3010
        %v3013 = vunpack.c.l.s4 1966171168
        %v3014 = vunpack.c.0.s8 %v3013
        %v3015 = vlaneseq
        %v3016 = vshrl.u32 %v3015, 7
        %v3017 = vsub.s32 %v3014, %v3016
        %v3018 = vrot.slane %v3004, %v3017
        %v3019 = vcombine.low %v3011, %v3018
        %v3021 = vunpack.c.l.s4 1966171168
        %v3022 = vunpack.c.0.s8 %v3021
        %v3023 = vlaneseq
        %v3024 = vshrl.u32 %v3023, 7
        %v3025 = vsub.s32 %v3022, %v3024
        %v3026 = vrot.slane %v3019, %v3025
        %v3028 = vlaneseq
        %vm3029 = vcmp.ge.s32.totalorder %v3028, 0
        %vm3030 = vcmp.lt.s32.totalorder %v3028, 512
        %vm3031 = vmand %vm3029, %vm3030
        %3032 = vst.msk [vmem:[%s448] sm:$0xf] %vm3031, %v3026
        %s3033 = sand.u32 %s315, 1
        %s3034 = scalar_lea.sflag [#allocation4], %s3033
        %s3035 = sand.u32 %s315, 1
        %s3036 = smul.addr %s3035, 4
        %s3037 = scalar_lea.vmem [#allocation3], %s3036
        // Predicated region
        $region73: #{features12_nn_forward.1} parent=71 // pred_check
          %p3038 = pneg %p325
        $region74: #{features12_nn_forward.1} parent=71 // pred_check_branch
          %3040 = sbr.rel (%p3038) target = $region76
        $region75: #{features12_nn_forward.1} parent=71 // pred_region
          %s3041 = smul.u32 4, %s29
          %s3043 = ssub.s32 64, 64
          %3044 = vsyncadd %s3034, %s3043
          %s3045 = smul.addr %s3041, 16
          %s3046 = scalar_lea.hbm %s13, %s3045
          %s3048 = sshll.u32 %s3037, 4
          %s3049 = int_to_ptr.vmem [resolvable:$true] %s3048
          %3051 = dma.vmem_to_hbm [thread:$0]  %s3049, 64, %s3046, %s3034
        $region76: #{features12_nn_forward.1} parent=71 // pred_fallthru
          _
      $region72: #{features12_nn_forward.1} parent=5 // pred_fallthru
        _
      %p3052 = scmp.le.s32.totalorder 2, %s24
      // Predicated region
      $region77: #{features12_nn_forward.1} parent=5 // pred_check
        %p3053 = pneg %p3052
      $region78: #{features12_nn_forward.1} parent=5 // pred_check_branch
        %3055 = sbr.rel (%p3053) target = $region80
      $region79: #{features12_nn_forward.1} parent=5 // pred_region
        %s3056 = ssub.s32 %s24, 2
        // Predicated region
        $region81: #{features12_nn_forward.1} parent=79 // pred_check
          %p3057 = pneg %p331
        $region82: #{features12_nn_forward.1} parent=79 // pred_check_branch
          %3059 = sbr.rel (%p3057) target = $region84
        $region83: #{features12_nn_forward.1} parent=79 // pred_region
          %s3060 = sand.u32 %s316, 1
          %s3061 = scalar_lea.sflag [#allocation4], %s3060
          %s3062 = sand.u32 %s316, 1
          %s3063 = smul.addr %s3062, 4
          %s3064 = scalar_lea.vmem [#allocation3], %s3063
          %3065 = dma.done %s3061, 64
        $region84: #{features12_nn_forward.1} parent=79 // pred_fallthru
          _
      $region80: #{features12_nn_forward.1} parent=5 // pred_fallthru
        _
    $region6: #{features12_nn_forward.1} parent=1 // loop_footer
      %s28 = sadd.s32 1, %s24
    $region7: #{features12_nn_forward.1} parent=1 // loop_footer_branch
      %23 = sbr.rel target = $region3
    $region8: #{features12_nn_forward.1} parent=1 // loop_exit
      _
    %3066 = vsyncpa [#allocation4], 1
    %s3067 = scalar_lea.sflag [#allocation4], 1
    %3068 = vsyncpa %s3067, 1

</llo_original>
